<compile_context>
chip_gen: v6e
topology: v6e:2x2x1
jax: 0.10.0
libtpu: 0.0.40
codegen_flags: <defaults>
</compile_context>

<pallas_src>
import functools

import jax
import jax.numpy as jnp
import numpy as np
from jax.experimental import pallas as pl
from jax.experimental.pallas import tpu as pltpu

_LANE = 128
_MIB = 1024 * 1024


def _round_up(x, m):
    return ((x + m - 1) // m) * m


def _pick_tile(n, candidates):
    """Largest candidate that divides n (falls back to the full extent)."""
    for c in candidates:
        if n % c == 0:
            return c
    return n


def _vmem_limit_bytes():
    """Generation-aware scoped-VMEM budget: ~16 MiB headroom below physical capacity
    (64 MiB on v7x, 128 MiB on v5e/v6e), capped at 100 MiB."""
    try:
        cap = pltpu.get_tpu_info().vmem_capacity_bytes
    except Exception:
        cap = 64 * _MIB  # conservative (v7x-sized) fallback
    return int(max(32 * _MIB, min(cap - 16 * _MIB, 100 * _MIB)))


# ---------------------------------------------------------------------------
# GraphConv layer:  h_i = relu( Wrel^T (sum_{j->i} h_j) + b + Wroot^T h_i )
# expressed as      relu( concat([A@h, h], -1) @ concat([Wrel; Wroot], 0) + b )
# ---------------------------------------------------------------------------
def _graphconv_kernel(fuse, a_ref, hk_ref, hi_ref, w_ref, b_ref, out_ref, acc_ref):
    k = pl.program_id(1)

    @pl.when(k == 0)
    def _init():
        acc_ref[...] = jnp.zeros_like(acc_ref)

    # Neighbor-sum partial:  A[i-tile, k-tile] @ h[k-tile].
    # A is stored int8 in HBM (edge multiplicities); cast to bf16 on the VPU
    # (exact for small counts), accumulate in f32 on the MXU.
    a_tile = a_ref[...].astype(jnp.bfloat16)
    acc_ref[...] += jnp.dot(a_tile, hk_ref[...], preferred_element_type=jnp.float32)

    @pl.when(k == pl.num_programs(1) - 1)
    def _project():
        nb = acc_ref[...].astype(jnp.bfloat16)          # [tm, C]
        hi = hi_ref[...]                                # [tm, C] (bf16)
        if fuse:
            # One MXU matmul with K = 2*C instead of two with K = C.
            cat = jnp.concatenate([nb, hi], axis=-1)    # [tm, 2C]
            pre = jnp.dot(cat, w_ref[...], preferred_element_type=jnp.float32)
        else:
            # Non-lane-aligned channel count (not hit after wrapper padding).
            w = w_ref[...]
            c = nb.shape[1]
            pre = (jnp.dot(nb, w[:c, :], preferred_element_type=jnp.float32)
                   + jnp.dot(hi, w[c:, :], preferred_element_type=jnp.float32))
        out_ref[...] = jnp.maximum(pre + b_ref[...], 0.0).astype(out_ref.dtype)


def graphconv_layer(h, a_i8, wcat_bf16, brel, *, tm, tk):
    """One GraphConv + ReLU layer.  h: [N, C] bf16, a: [N, N] int8, wcat: [2C, H] bf16."""
    N, C = h.shape
    H = wcat_bf16.shape[1]
    assert N % tm == 0 and N % tk == 0, "node count must be a multiple of the tile sizes"
    grid = (N // tm, N // tk)
    fuse = (C % _LANE == 0)  # concat offsets lane-aligned -> fused single-dot path

    flops = 2 * N * N * C + 2 * N * (2 * C) * H
    bytes_accessed = N * N + 2 * (3 * N * C + N * H + 2 * C * H) + 4 * H

    return pl.pallas_call(
        functools.partial(_graphconv_kernel, fuse),
        out_shape=jax.ShapeDtypeStruct((N, H), jnp.bfloat16),
        grid_spec=pltpu.PrefetchScalarGridSpec(
            num_scalar_prefetch=0,
            grid=grid,
            in_specs=[
                pl.BlockSpec((tm, tk), lambda i, k: (i, k)),    # A tile (int8)
                pl.BlockSpec((tk, C), lambda i, k: (k, 0)),     # h rows (reduction)
                pl.BlockSpec((tm, C), lambda i, k: (i, 0)),     # h rows (root term)
                pl.BlockSpec((2 * C, H), lambda i, k: (0, 0)),  # fused [Wrel; Wroot]
                pl.BlockSpec((1, H), lambda i, k: (0, 0)),      # bias
            ],
            out_specs=pl.BlockSpec((tm, H), lambda i, k: (i, 0)),
            scratch_shapes=[pltpu.VMEM((tm, C), jnp.float32)],
        ),
        compiler_params=pltpu.CompilerParams(
            dimension_semantics=("parallel", "arbitrary"),
            vmem_limit_bytes=_vmem_limit_bytes()),
        cost_estimate=pl.CostEstimate(flops=flops, transcendentals=0,
                                      bytes_accessed=bytes_accessed),
    )(a_i8, h, h, wcat_bf16, brel)


# ---------------------------------------------------------------------------
# Epilogue: ego add-pool -> down projection -> SoftmaxAggregation -> MLP
# ---------------------------------------------------------------------------
def _epilogue_kernel(eps, pego_ref, h_ref, wdown_ref, mask_ref, maskt_ref,
                     w1_ref, b1_ref, w2_ref, b2_ref, out_ref, xego_acc):
    k = pl.program_id(0)

    @pl.when(k == 0)
    def _init():
        xego_acc[...] = jnp.zeros_like(xego_acc)

    # global_add_pool over ego groups, accumulated over node tiles.
    xego_acc[...] += jnp.dot(pego_ref[...], h_ref[...],
                             preferred_element_type=jnp.float32)

    @pl.when(k == pl.num_programs(0) - 1)
    def _finish():
        bf = jnp.bfloat16
        f32 = jnp.float32
        # Down projection (pool-then-project == project-then-pool; both linear).
        x_ego = jnp.dot(xego_acc[...].astype(bf), wdown_ref[...],
                        preferred_element_type=f32)                       # [G, P]
        mask = mask_ref[...]                                              # [B, G] f32 0/1
        maskt = maskt_ref[...]                                            # [G, B] f32 0/1

        # SoftmaxAggregation(t=1): per-graph, per-channel softmax-weighted mean,
        # entirely in f32.  Per-graph max via one broadcast masked max (no python
        # loop over graphs); group sums as small f32 mask matmuls.
        neg = jnp.float32(-1e30)
        masked = jnp.where(mask[:, :, None] > 0.5, x_ego[None, :, :], neg)  # [B,G,P]
        mx_b = jnp.max(masked, axis=1)                                      # [B, P]
        mx_g = jnp.dot(maskt, mx_b, preferred_element_type=f32)             # [G, P]
        w = jnp.exp(x_ego - mx_g)                                           # <= 1 in-group
        denom = jnp.dot(mask, w, preferred_element_type=f32)                # [B, P]
        numer = jnp.dot(mask, w * x_ego, preferred_element_type=f32)        # [B, P]
        # Empty graphs return 0 through the denom guard (documented behavior).
        xb = numer * pl.reciprocal(jnp.maximum(denom, 1e-20), approx=True)

        # MLP: Linear -> BatchNorm1d (training-mode batch stats) -> ReLU -> Linear.
        hm = jnp.dot(xb.astype(bf), w1_ref[...],
                     preferred_element_type=f32) + b1_ref[...]
        mean = jnp.mean(hm, axis=0, keepdims=True)
        var = jnp.mean((hm - mean) ** 2, axis=0, keepdims=True)
        hm = jnp.maximum((hm - mean) * jax.lax.rsqrt(var + eps), 0.0)
        out_ref[...] = (jnp.dot(hm.astype(bf), w2_ref[...],
                                preferred_element_type=f32) + b2_ref[...])


def egonn_epilogue(h_bf16, pego_bf16, wdown_bf16, mask, maskt,
                   w1_bf16, b1, w2p_bf16, b2p, *, eps, tk):
    N, H = h_bf16.shape
    G = pego_bf16.shape[0]
    P = wdown_bf16.shape[1]
    B = mask.shape[0]
    H1 = w1_bf16.shape[1]
    OUTP = w2p_bf16.shape[1]
    assert N % tk == 0
    grid = (N // tk,)

    flops = (2 * G * N * H + 2 * G * H * P + 8 * B * G * P
             + 2 * B * P * H1 + 2 * B * H1 * OUTP)
    bytes_accessed = 2 * (N * H + H * P + P * H1 + H1 * OUTP) + G * N + 4 * B * OUTP

    return pl.pallas_call(
        functools.partial(_epilogue_kernel, eps),
        out_shape=jax.ShapeDtypeStruct((B, OUTP), jnp.float32),
        grid_spec=pltpu.PrefetchScalarGridSpec(
            num_scalar_prefetch=0,
            grid=grid,
            in_specs=[
                pl.BlockSpec((G, tk), lambda k: (0, k)),     # P_ego tile
                pl.BlockSpec((tk, H), lambda k: (k, 0)),     # h tile
                pl.BlockSpec((H, P), lambda k: (0, 0)),      # w_down
                pl.BlockSpec((B, G), lambda k: (0, 0)),      # graph membership mask
                pl.BlockSpec((G, B), lambda k: (0, 0)),      # mask^T
                pl.BlockSpec((P, H1), lambda k: (0, 0)),     # mlp w1
                pl.BlockSpec((1, H1), lambda k: (0, 0)),     # mlp b1
                pl.BlockSpec((H1, OUTP), lambda k: (0, 0)),  # mlp w2 (lane-padded)
                pl.BlockSpec((1, OUTP), lambda k: (0, 0)),   # mlp b2 (lane-padded)
            ],
            out_specs=pl.BlockSpec((B, OUTP), lambda k: (0, 0)),
            scratch_shapes=[pltpu.VMEM((G, H), jnp.float32)],
        ),
        compiler_params=pltpu.CompilerParams(
            dimension_semantics=("arbitrary",),
            vmem_limit_bytes=_vmem_limit_bytes()),
        cost_estimate=pl.CostEstimate(flops=flops, transcendentals=G * P,
                                      bytes_accessed=bytes_accessed),
    )(pego_bf16, h_bf16, wdown_bf16, mask, maskt, w1_bf16, b1, w2p_bf16, b2p)


# ---------------------------------------------------------------------------
# Full forward
# ---------------------------------------------------------------------------
def egonn_forward(x, A, conv_params, w_down, P_ego, gb, mlp_params, num_graphs,
                  *, eps=1e-5):
    """EGONN forward.  gb: int32 [G] graph id of each ego group."""
    bf = jnp.bfloat16
    N = x.shape[0]

    # A stored as int8 (edge multiplicities are small integers): halves the dominant
    # HBM stream vs bf16 / quarters vs f32 on every generation.  The kernel casts the
    # streamed tile to bf16 on the VPU, so the MXU path is uniform across v5e/v6e/v7x.
    a_i8 = jnp.round(A).astype(jnp.int8)

    tm = _pick_tile(N, (256, 128, 64, 32, 16, 8))       # row tiles (MXU M, megacore)
    tk = _pick_tile(N, (1024, 512, 256, 128, 64, 32))   # large streamed A reduction tile

    h = x.astype(bf)
    for (wrel, brel, wroot) in conv_params:
        C = h.shape[1]
        Cp = _round_up(C, _LANE)
        if Cp != C:
            # Lane-align the channel dim (zero-pad h columns / weight rows) so the
            # fused concat-matmul path is always used and no MXU lanes are wasted.
            h = jnp.pad(h, ((0, 0), (0, Cp - C)))
            wrel = jnp.pad(wrel, ((0, Cp - C), (0, 0)))
            wroot = jnp.pad(wroot, ((0, Cp - C), (0, 0)))
        wcat = jnp.concatenate([wrel, wroot], axis=0).astype(bf)
        h = graphconv_layer(h, a_i8, wcat, brel, tm=tm, tk=tk)

    # [B, G] one-hot graph membership of each ego group, kept f32 so the
    # softmax-aggregation group sums stay exact on MXU/VPU.
    mask = (gb[None, :] == jnp.arange(num_graphs, dtype=gb.dtype)[:, None]
            ).astype(jnp.float32)
    maskt = mask.T

    out_ch = mlp_params["w2"].shape[1]
    out_pad = _round_up(out_ch, _LANE)                  # lane-dense output slab
    w2p = jnp.pad(mlp_params["w2"], ((0, 0), (0, out_pad - out_ch)))
    b2p = jnp.pad(mlp_params["b2"], ((0, 0), (0, out_pad - out_ch)))

    tk_e = _pick_tile(N, (512, 256, 128, 64, 32))
    out = egonn_epilogue(h, P_ego.astype(bf), w_down.astype(bf), mask, maskt,
                         mlp_params["w1"].astype(bf), mlp_params["b1"],
                         w2p.astype(bf), b2p, eps=eps, tk=tk_e)
    return out[:, :out_ch]


def egonn_reference(x, A, conv_params, w_down, P_ego, gb, mlp_params, num_graphs,
                    eps=1e-5):
    """Pure-JAX reference of the module's forward pass.

    Matmul operands are cast to bfloat16 (f32 accumulation) to mirror the kernel's
    MXU precision, so the comparison isolates kernel correctness rather than the
    mixed-precision policy.
    """
    bf, f32 = jnp.bfloat16, jnp.float32
    h = x.astype(bf)
    a = A.astype(bf)
    for (wrel, brel, wroot) in conv_params:
        wcat = jnp.concatenate([wrel, wroot], axis=0).astype(bf)
        nb = jnp.dot(a, h, preferred_element_type=f32)
        pre = jnp.dot(jnp.concatenate([nb.astype(bf), h], axis=-1), wcat,
                      preferred_element_type=f32) + brel
        h = jnp.maximum(pre, 0.0).astype(bf)
    # ego add-pool then down-projection (== project-then-pool; both are linear).
    x_ego = jnp.dot(jnp.dot(P_ego.astype(bf), h, preferred_element_type=f32).astype(bf),
                    w_down.astype(bf), preferred_element_type=f32)          # [G, P]
    # SoftmaxAggregation(t=1) per graph, per channel.
    rows = []
    for b in range(num_graphs):
        member = (gb == b).reshape(-1, 1)
        xm = jnp.where(member, x_ego, -jnp.inf)
        mx = jnp.max(xm, axis=0, keepdims=True)
        wgt = jnp.where(member, jnp.exp(x_ego - mx), 0.0)
        rows.append(jnp.sum(wgt * x_ego, axis=0, keepdims=True)
                    / jnp.sum(wgt, axis=0, keepdims=True))
    xb = jnp.concatenate(rows, axis=0)                                      # [B, P]
    # MLP: Linear -> BatchNorm1d (training-mode batch stats) -> ReLU -> Linear.
    hm = jnp.dot(xb.astype(bf), mlp_params["w1"].astype(bf),
                 preferred_element_type=f32) + mlp_params["b1"]
    mean = jnp.mean(hm, axis=0, keepdims=True)
    var = jnp.mean((hm - mean) ** 2, axis=0, keepdims=True)
    hm = jnp.maximum((hm - mean) * jax.lax.rsqrt(var + eps), 0.0)
    return jnp.dot(hm.astype(bf), mlp_params["w2"].astype(bf),
                   preferred_element_type=f32) + mlp_params["b2"]


if __name__ == "__main__":
    # ---- small synthetic problem (tile-friendly sizes) ----
    B = 4                  # graphs in the batch
    n_per = 128            # nodes per graph
    N = B * n_per          # 512 nodes
    in_ch, hidden, pattern, out_ch, layers = 4, 128, 128, 4, 2
    ego_per = 8            # ego groups per graph
    G = B * ego_per

    key = jax.random.PRNGKey(0)
    keys = jax.random.split(key, 16)

    # node features
    x = jax.random.normal(keys[0], (N, in_ch), jnp.float32)

    # deterministic connectivity: bidirectional ring inside each graph
    idx = jnp.arange(N, dtype=jnp.int32)
    graph_of = idx // n_per
    nxt = graph_of * n_per + (idx % n_per + 1) % n_per
    src = jnp.concatenate([idx, nxt])
    dst = jnp.concatenate([nxt, idx])
    # A[i, j] = #edges j -> i  (GraphConv aggregates source j at target i)
    A = jnp.zeros((N, N), jnp.float32).at[dst, src].add(1.0)

    # per-node graph id and local ego id; combine like the module does
    batch_vec = jnp.repeat(jnp.arange(B, dtype=jnp.int32), n_per)
    ego_local = idx % ego_per                               # n_per % ego_per == 0
    ego = ego_local + batch_vec * (jnp.max(ego_local) + 1)  # global ego ids
    P_ego = jax.nn.one_hot(ego, G, dtype=jnp.float32).T     # [G, N]
    # batch = global_max_pool(batch_vec, ego), kept as int32
    gb = jax.ops.segment_max(batch_vec, ego, num_segments=G).astype(jnp.int32)

    # ---- deterministic parameters (PyTorch Linear weights transposed to [in, out]) ----
    def lin(k, fan_in, fan_out):
        s = 1.0 / (fan_in ** 0.5)
        return jax.random.uniform(k, (fan_in, fan_out), jnp.float32, -s, s)

    conv_params = []
    c_in = in_ch
    for l in range(layers):
        kw = jax.random.split(keys[1 + l], 3)
        s = 1.0 / (c_in ** 0.5)
        wrel = lin(kw[0], c_in, hidden)
        brel = jax.random.uniform(kw[1], (1, hidden), jnp.float32, -s, s)
        wroot = lin(kw[2], c_in, hidden)                    # lin_root has no bias
        conv_params.append((wrel, brel, wroot))
        c_in = hidden

    w_down = lin(keys[8], hidden, pattern)                  # Linear(..., bias=False)
    s1 = 1.0 / (pattern ** 0.5)
    s2 = 1.0 / ((2 * out_ch) ** 0.5)
    mlp_params = {
        "w1": lin(keys[9], pattern, 2 * out_ch),
        "b1": jax.random.uniform(keys[10], (1, 2 * out_ch), jnp.float32, -s1, s1),
        "w2": lin(keys[11], 2 * out_ch, out_ch),
        "b2": jax.random.uniform(keys[12], (1, out_ch), jnp.float32, -s2, s2),
    }

    # ---- run fused Pallas kernels ----
    out = egonn_forward(x, A, conv_params, w_down, P_ego, gb, mlp_params, B)
    out = jax.block_until_ready(out)
    assert out.shape == (B, out_ch)

    # ---- sanity check vs pure-JAX reference ----
    ref = egonn_reference(x, A, conv_params, w_down, P_ego, gb, mlp_params, B)
    ref = jax.block_until_ready(ref)
    if not np.allclose(np.asarray(out), np.asarray(ref), atol=5e-2, rtol=5e-2):
        raise AssertionError("Pallas kernel output mismatch vs reference")

    print("KERNEL_OK")
</pallas_src>

<mosaic_0001>
module attributes {stable_mosaic.version = 11 : i64} {
  func.func @_graphconv_kernel(%arg0: i32, %arg1: i32, %arg2: memref<256x512xi8, #tpu.memory_space<vmem>>, %arg3: memref<512x128xbf16, #tpu.memory_space<vmem>>, %arg4: memref<256x128xbf16, #tpu.memory_space<vmem>>, %arg5: memref<256x128xbf16, #tpu.memory_space<vmem>>, %arg6: memref<1x128xf32, #tpu.memory_space<vmem>>, %arg7: memref<256x128xbf16, #tpu.memory_space<vmem>>, %arg8: memref<256x128xf32, #tpu.memory_space<vmem>>) attributes {dimension_semantics = [#tpu.dimension_semantics<parallel>, #tpu.dimension_semantics<arbitrary>], iteration_bounds = array<i64: 2, 1>, scalar_prefetch = 0 : i64, scratch_operands = 1 : i64, tpu.core_type = #tpu.core_type<tc>, window_params = [{transform_indices = @transform_0, window_bounds = array<i64: 256, 512>}, {transform_indices = @transform_1, window_bounds = array<i64: 512, 128>}, {transform_indices = @transform_2, window_bounds = array<i64: 256, 128>}, {pipeline_mode = #tpu.pipeline_mode<synchronous>, transform_indices = @transform_3, window_bounds = array<i64: 256, 128>}, {pipeline_mode = #tpu.pipeline_mode<synchronous>, transform_indices = @transform_4, window_bounds = array<i64: 1, 128>}, {transform_indices = @transform_5, window_bounds = array<i64: 256, 128>}]} {
    %c0_i32 = arith.constant 0 : i32
    %0 = arith.cmpi eq, %arg1, %c0_i32 : i32
    %1 = arith.extui %0 : i1 to i32
    %c0_i32_0 = arith.constant 0 : i32
    %2 = arith.cmpi ne, %1, %c0_i32_0 : i32
    scf.if %2 {
      %cst_10 = arith.constant 0.000000e+00 : f32
      %13 = vector.broadcast %cst_10 : f32 to vector<256x128xf32>
      %c0_11 = arith.constant 0 : index
      %c0_12 = arith.constant 0 : index
      %14 = vector.load %arg8[%c0_11, %c0_12] : memref<256x128xf32, #tpu.memory_space<vmem>>, vector<256x128xf32>
      tpu.vector_store %arg8[%c0_11, %c0_12], %13 {strides = array<i32>} : memref<256x128xf32, #tpu.memory_space<vmem>>, vector<256x128xf32>,
    } else {
    }
    %c0 = arith.constant 0 : index
    %c0_1 = arith.constant 0 : index
    %3 = vector.load %arg2[%c0, %c0_1] : memref<256x512xi8, #tpu.memory_space<vmem>>, vector<256x512xi8>
    %4 = arith.sitofp %3 : vector<256x512xi8> to vector<256x512xbf16>
    %c0_2 = arith.constant 0 : index
    %c0_3 = arith.constant 0 : index
    %5 = vector.load %arg8[%c0_2, %c0_3] : memref<256x128xf32, #tpu.memory_space<vmem>>, vector<256x128xf32>
    %c0_4 = arith.constant 0 : index
    %c0_5 = arith.constant 0 : index
    %6 = vector.load %arg3[%c0_4, %c0_5] : memref<512x128xbf16, #tpu.memory_space<vmem>>, vector<512x128xbf16>
    %cst = arith.constant dense<0.000000e+00> : vector<256x128xf32>
    %7 = tpu.matmul %4, %6, %cst {dimension_numbers = #tpu.dot_dimension_numbers<[1], [0], [0], [1], [0, 0, 1, 1], [], []>} : vector<256x512xbf16>, vector<512x128xbf16>, vector<256x128xf32> -> vector<256x128xf32>
    %8 = arith.addf %5, %7 : vector<256x128xf32>
    %c0_6 = arith.constant 0 : index
    %c0_7 = arith.constant 0 : index
    %9 = vector.load %arg8[%c0_6, %c0_7] : memref<256x128xf32, #tpu.memory_space<vmem>>, vector<256x128xf32>
    tpu.vector_store %arg8[%c0_6, %c0_7], %8 {strides = array<i32>} : memref<256x128xf32, #tpu.memory_space<vmem>>, vector<256x128xf32>,
    %c0_i32_8 = arith.constant 0 : i32
    %10 = arith.cmpi eq, %arg1, %c0_i32_8 : i32
    %11 = arith.extui %10 : i1 to i32
    %c0_i32_9 = arith.constant 0 : i32
    %12 = arith.cmpi ne, %11, %c0_i32_9 : i32
    scf.if %12 {
      %c0_10 = arith.constant 0 : index
      %c0_11 = arith.constant 0 : index
      %13 = vector.load %arg8[%c0_10, %c0_11] : memref<256x128xf32, #tpu.memory_space<vmem>>, vector<256x128xf32>
      %14 = arith.truncf %13 : vector<256x128xf32> to vector<256x128xbf16>
      %c0_12 = arith.constant 0 : index
      %c0_13 = arith.constant 0 : index
      %15 = vector.load %arg4[%c0_12, %c0_13] : memref<256x128xbf16, #tpu.memory_space<vmem>>, vector<256x128xbf16>
      %16 = tpu.concatenate %14, %15 in 1 : vector<256x128xbf16>, vector<256x128xbf16> -> vector<256x256xbf16>
      %c0_14 = arith.constant 0 : index
      %c0_15 = arith.constant 0 : index
      %17 = vector.load %arg5[%c0_14, %c0_15] : memref<256x128xbf16, #tpu.memory_space<vmem>>, vector<256x128xbf16>
      %cst_16 = arith.constant dense<0.000000e+00> : vector<256x128xf32>
      %18 = tpu.matmul %16, %17, %cst_16 {dimension_numbers = #tpu.dot_dimension_numbers<[1], [0], [0], [1], [0, 0, 1, 1], [], []>} : vector<256x256xbf16>, vector<256x128xbf16>, vector<256x128xf32> -> vector<256x128xf32>
      %c0_17 = arith.constant 0 : index
      %c0_18 = arith.constant 0 : index
      %19 = vector.load %arg6[%c0_17, %c0_18] : memref<1x128xf32, #tpu.memory_space<vmem>>, vector<1x128xf32>
      %20 = vector.broadcast %19 : vector<1x128xf32> to vector<256x128xf32>
      %21 = arith.addf %18, %20 : vector<256x128xf32>
      %cst_19 = arith.constant 0.000000e+00 : f32
      %22 = vector.broadcast %cst_19 : f32 to vector<256x128xf32>
      %23 = arith.maximumf %21, %22 : vector<256x128xf32>
      %24 = arith.truncf %23 : vector<256x128xf32> to vector<256x128xbf16>
      %c0_20 = arith.constant 0 : index
      %c0_21 = arith.constant 0 : index
      %25 = vector.load %arg7[%c0_20, %c0_21] : memref<256x128xbf16, #tpu.memory_space<vmem>>, vector<256x128xbf16>
      tpu.vector_store %arg7[%c0_20, %c0_21], %24 {strides = array<i32>} : memref<256x128xbf16, #tpu.memory_space<vmem>>, vector<256x128xbf16>,
    } else {
    }
    return
  }
  func.func @transform_0(%arg0: i32, %arg1: i32) -> (i32, i32) {
    %c0_i32 = arith.constant 0 : i32
    return %arg0, %arg1 : i32, i32
  }
  func.func @transform_1(%arg0: i32, %arg1: i32) -> (i32, i32) {
    %c0_i32 = arith.constant 0 : i32
    %c0_i32_0 = arith.constant 0 : i32
    return %arg1, %c0_i32 : i32, i32
  }
  func.func @transform_2(%arg0: i32, %arg1: i32) -> (i32, i32) {
    %c0_i32 = arith.constant 0 : i32
    %c0_i32_0 = arith.constant 0 : i32
    return %arg0, %c0_i32 : i32, i32
  }
  func.func @transform_3(%arg0: i32, %arg1: i32) -> (i32, i32) {
    %c0_i32 = arith.constant 0 : i32
    %c0_i32_0 = arith.constant 0 : i32
    %c0_i32_1 = arith.constant 0 : i32
    return %c0_i32, %c0_i32_0 : i32, i32
  }
  func.func @transform_4(%arg0: i32, %arg1: i32) -> (i32, i32) {
    %c0_i32 = arith.constant 0 : i32
    %c0_i32_0 = arith.constant 0 : i32
    %c0_i32_1 = arith.constant 0 : i32
    return %c0_i32, %c0_i32_0 : i32, i32
  }
  func.func @transform_5(%arg0: i32, %arg1: i32) -> (i32, i32) {
    %c0_i32 = arith.constant 0 : i32
    %c0_i32_0 = arith.constant 0 : i32
    return %arg0, %c0_i32 : i32, i32
  }
}

</mosaic_0001>

<llo_original>
// kernel: tpu_custom_call.1
$region0: #{tpu_custom_call.1}
  #allocation0 [shape = 'u32[]', space=smem, size = 0x4, offset = 0x4, fixed_abs, tag = 'smem constant byte address 0x4 - core index']
  #allocation1 [shape = 'u32[144,128]{1,0:T(1,128)}', space=vmem, size = 0x12000, scoped, tag = 'internal scratch']
  #allocation2 [shape = 'f32[256,128]{1,0:T(8,128)}', space=vmem, size = 0x20000, scoped, tag = 'scratch operand']
  %s0 = inlined_call_operand.hbm [shape: s8[512,512], index: 0, kind: input, shape index: {}]
  %s1 = inlined_call_operand.hbm [shape: bf16[512,128], index: 1, kind: input, shape index: {}]
  %s2 = inlined_call_operand.hbm [shape: bf16[512,128], index: 2, kind: input, shape index: {}]
  %s3 = inlined_call_operand.hbm [shape: bf16[256,128], index: 3, kind: input, shape index: {}]
  %s4 = inlined_call_operand.vmem [shape: f32[1,128], index: 4, kind: input, shape index: {}]
  %s5 = inlined_call_operand.hbm [shape: bf16[512,128], index: 5, kind: output, shape index: {}]
  %s6 = sld [smem:[#allocation0]]
  $region77: #{tpu_custom_call.1} parent=0
    _
  %s8 = ssub.s32 1, %s6
  %s9 = scalar_select 0, %s8, %s6
  $region1: #{tpu_custom_call.1} parent=0
    #allocation3 [shape = 'u8[262144]{0}', space=vmem, size = 0x40000, scoped, tag = 'input window, operand 0']
    #allocation4 [shape = 's32[2]{0}', space=sflag, size = 0x8, scoped, tag = 'scoped memory for tpu_custom_call.1']
    #allocation5 [shape = 's32[2]{0}', space=sflag, size = 0x8, scoped, tag = 'scoped memory for tpu_custom_call.1']
    #allocation6 [shape = 'u8[131072]{0}', space=vmem, size = 0x20000, scoped, tag = 'input window, operand 1, single buffered']
    #allocation7 [shape = 's32[1]{0}', space=sflag, size = 0x4, scoped, tag = 'scoped memory for tpu_custom_call.1']
    #allocation8 [shape = 'u8[131072]{0}', space=vmem, size = 0x20000, scoped, tag = 'input window, operand 2']
    #allocation9 [shape = 'u8[65536]{0}', space=vmem, size = 0x10000, scoped, tag = 'input window, operand 3, single buffered']
    #allocation10 [shape = 'u8[131072]{0}', space=vmem, size = 0x20000, scoped, tag = 'output window, operand 0']
    %10 = vsyncpa [#allocation4], 0
    %s11 = scalar_lea.sflag [#allocation4], 1
    %12 = vsyncpa %s11, 0
    %13 = vsyncpa [#allocation7], 0
    %14 = vsyncpa [#allocation5], 0
    %s15 = scalar_lea.sflag [#allocation5], 1
    %16 = vsyncpa %s15, 0
    loop: start=0, step=1, limit=4
    $region2: #{tpu_custom_call.1} parent=1 // loop_pre_header
      _
    $region3: #{tpu_custom_call.1} parent=1 // loop_header
      %s18 = sphi 0, %s22
      %p19 = scmp.ge.s32.totalorder %s18, 4
      %s25 = sphi 0, %s37
      %s26 = sphi 0, %s33
      %s27 = sphi 0, %s25
      %s28 = sphi 0, %s26
      %s29 = sphi 0, %s27
      %s30 = sphi 0, %s28
      %s42 = sphi 0, %s44
      %s45 = sphi 0, %s42
      %s46 = sphi 0, %s45
      %s62 = sphi 0, %s46
      %s68 = sphi 0, %s70
      %s71 = sphi 0, %s68
      %s72 = sphi 0, %s71
      %s88 = sphi 0, %s72
      %s94 = sphi 0, %s96
      %s97 = sphi 0, %s94
      %s98 = sphi 0, %s97
      %s114 = sphi 0, %s98
      %s118 = sphi 0, %s118
      %s120 = sphi 0, %s118
      %s121 = sphi 0, %s120
      %s135 = sphi 0, %s121
      %s139 = sphi 0, %s139
      %s141 = sphi 0, %s139
      %s142 = sphi 0, %s141
      %s156 = sphi 0, %s142
      %s162 = sphi 0, %s164
      %s165 = sphi 0, %s162
      %s166 = sphi 0, %s165
      %s182 = sphi 0, %s166
    $region4: #{tpu_custom_call.1} parent=1 // loop_header_branch
      %21 = sbr.rel (%p19) target = $region8
    $region5: #{tpu_custom_call.1} parent=1 // loop_body
      %s23 = ssub.s32 %s18, 1
      %s24 = ssub.s32 %s18, 2
      %s31 = sadd.s32 1, %s26
      %p32 = scmp.ge.s32.totalorder %s31, 1
      %s33 = scalar_select %p32, 0, %s31
      %s34 = sadd.s32 1, %s25
      %s35 = scalar_select %p32, %s34, %s25
      %p36 = scmp.ge.s32.totalorder %s35, 2
      %s37 = scalar_select %p36, 0, %s35
      %s38 = ssub.s32 %s25, %s37
      %s39 = ssub.s32 %s26, %s33
      %s40 = sor.u32 %s38, %s39
      %p41 = scmp.eq.s32.totalorder %s40, 0
      %s43 = sadd.s32 %s42, 1
      %s44 = scalar_select %p41, %s42, %s43
      %p47 = pneg %p41
      %p48 = scmp.eq.s32.totalorder %s18, 1
      %p49 = por %p47, %p48
      %p50 = scmp.ne.s32.totalorder %s42, %s45
      %p51 = scmp.eq.s32.totalorder %s18, 0
      %p52 = por %p50, %p51
      %p53 = scmp.ne.s32.totalorder %s42, %s45
      %p54 = scmp.eq.s32.totalorder %s23, 1
      %p55 = por %p53, %p54
      %p56 = scmp.ne.s32.totalorder %s45, %s46
      %p57 = scmp.eq.s32.totalorder %s23, 0
      %p58 = por %p56, %p57
      %p59 = scmp.ne.s32.totalorder %s45, %s46
      %p60 = scmp.eq.s32.totalorder %s24, 1
      %p61 = por %p59, %p60
      %p63 = scmp.ne.s32.totalorder %s46, %s62
      %p64 = scmp.eq.s32.totalorder %s24, 0
      %p65 = por %p63, %p64
      %s66 = ssub.s32 %s26, %s33
      %p67 = scmp.eq.s32.totalorder %s66, 0
      %s69 = sadd.s32 %s68, 1
      %s70 = scalar_select %p67, %s68, %s69
      %p73 = pneg %p67
      %p74 = scmp.eq.s32.totalorder %s18, 1
      %p75 = por %p73, %p74
      %p76 = scmp.ne.s32.totalorder %s68, %s71
      %p77 = scmp.eq.s32.totalorder %s18, 0
      %p78 = por %p76, %p77
      %p79 = scmp.ne.s32.totalorder %s68, %s71
      %p80 = scmp.eq.s32.totalorder %s23, 1
      %p81 = por %p79, %p80
      %p82 = scmp.ne.s32.totalorder %s71, %s72
      %p83 = scmp.eq.s32.totalorder %s23, 0
      %p84 = por %p82, %p83
      %p85 = scmp.ne.s32.totalorder %s71, %s72
      %p86 = scmp.eq.s32.totalorder %s24, 1
      %p87 = por %p85, %p86
      %p89 = scmp.ne.s32.totalorder %s72, %s88
      %p90 = scmp.eq.s32.totalorder %s24, 0
      %p91 = por %p89, %p90
      %s92 = ssub.s32 %s25, %s37
      %p93 = scmp.eq.s32.totalorder %s92, 0
      %s95 = sadd.s32 %s94, 1
      %s96 = scalar_select %p93, %s94, %s95
      %p99 = pneg %p93
      %p100 = scmp.eq.s32.totalorder %s18, 1
      %p101 = por %p99, %p100
      %p102 = scmp.ne.s32.totalorder %s94, %s97
      %p103 = scmp.eq.s32.totalorder %s18, 0
      %p104 = por %p102, %p103
      %p105 = scmp.ne.s32.totalorder %s94, %s97
      %p106 = scmp.eq.s32.totalorder %s23, 1
      %p107 = por %p105, %p106
      %p108 = scmp.ne.s32.totalorder %s97, %s98
      %p109 = scmp.eq.s32.totalorder %s23, 0
      %p110 = por %p108, %p109
      %p111 = scmp.ne.s32.totalorder %s97, %s98
      %p112 = scmp.eq.s32.totalorder %s24, 1
      %p113 = por %p111, %p112
      %p115 = scmp.ne.s32.totalorder %s98, %s114
      %p116 = scmp.eq.s32.totalorder %s24, 0
      %p117 = por %p115, %p116
      %s119 = sadd.s32 %s118, 1
      %p122 = scmp.eq.s32.totalorder %s18, 1
      %p123 = scmp.ne.s32.totalorder %s118, %s120
      %p124 = scmp.eq.s32.totalorder %s18, 0
      %p125 = por %p123, %p124
      %p126 = scmp.ne.s32.totalorder %s118, %s120
      %p127 = scmp.eq.s32.totalorder %s23, 1
      %p128 = por %p126, %p127
      %p129 = scmp.ne.s32.totalorder %s120, %s121
      %p130 = scmp.eq.s32.totalorder %s23, 0
      %p131 = por %p129, %p130
      %p132 = scmp.ne.s32.totalorder %s120, %s121
      %p133 = scmp.eq.s32.totalorder %s24, 1
      %p134 = por %p132, %p133
      %p136 = scmp.ne.s32.totalorder %s121, %s135
      %p137 = scmp.eq.s32.totalorder %s24, 0
      %p138 = por %p136, %p137
      %s140 = sadd.s32 %s139, 1
      %p143 = scmp.eq.s32.totalorder %s18, 1
      %p144 = scmp.ne.s32.totalorder %s139, %s141
      %p145 = scmp.eq.s32.totalorder %s18, 0
      %p146 = por %p144, %p145
      %p147 = scmp.ne.s32.totalorder %s139, %s141
      %p148 = scmp.eq.s32.totalorder %s23, 1
      %p149 = por %p147, %p148
      %p150 = scmp.ne.s32.totalorder %s141, %s142
      %p151 = scmp.eq.s32.totalorder %s23, 0
      %p152 = por %p150, %p151
      %p153 = scmp.ne.s32.totalorder %s141, %s142
      %p154 = scmp.eq.s32.totalorder %s24, 1
      %p155 = por %p153, %p154
      %p157 = scmp.ne.s32.totalorder %s142, %s156
      %p158 = scmp.eq.s32.totalorder %s24, 0
      %p159 = por %p157, %p158
      %s160 = ssub.s32 %s25, %s37
      %p161 = scmp.eq.s32.totalorder %s160, 0
      %s163 = sadd.s32 %s162, 1
      %s164 = scalar_select %p161, %s162, %s163
      %p167 = pneg %p161
      %p168 = scmp.eq.s32.totalorder %s18, 1
      %p169 = por %p167, %p168
      %p170 = scmp.ne.s32.totalorder %s162, %s165
      %p171 = scmp.eq.s32.totalorder %s18, 0
      %p172 = por %p170, %p171
      %p173 = scmp.ne.s32.totalorder %s162, %s165
      %p174 = scmp.eq.s32.totalorder %s23, 1
      %p175 = por %p173, %p174
      %p176 = scmp.ne.s32.totalorder %s165, %s166
      %p177 = scmp.eq.s32.totalorder %s23, 0
      %p178 = por %p176, %p177
      %p179 = scmp.ne.s32.totalorder %s165, %s166
      %p180 = scmp.eq.s32.totalorder %s24, 1
      %p181 = por %p179, %p180
      %p183 = scmp.ne.s32.totalorder %s166, %s182
      %p184 = scmp.eq.s32.totalorder %s24, 0
      %p185 = por %p183, %p184
      %p186 = scmp.le.s32.totalorder 1, %s18
      %p187 = scmp.lt.s32.totalorder %s18, 3
      %p188 = pnand %p186, %p187
      %p189 = pneg %p188
      // Predicated region
      $region9: #{tpu_custom_call.1} parent=5 // pred_check
        _
      $region10: #{tpu_custom_call.1} parent=5 // pred_check_branch
        %191 = sbr.rel (%p188) target = $region12
      $region11: #{tpu_custom_call.1} parent=5 // pred_region
        %s192 = ssub.s32 %s18, 1
        // Predicated region
        $region13: #{tpu_custom_call.1} parent=11 // pred_check
          %p193 = pneg %p84
        $region14: #{tpu_custom_call.1} parent=11 // pred_check_branch
          %195 = sbr.rel (%p193) target = $region16
        $region15: #{tpu_custom_call.1} parent=11 // pred_region
          %s196 = smul.u32 64, %s28
          %s198 = ssub.s32 4096, 4096
          %199 = vsyncadd [#allocation7], %s198
          %s200 = smul.addr %s196, 64
          %s201 = scalar_lea.hbm %s1, %s200
          %s202 = sshll.u32 [#allocation6], 4
          %s203 = int_to_ptr.vmem [resolvable:$true] %s202
          %208 = dma.hbm_to_vmem [thread:$0]  %s201, 4096, %s203, [#allocation7], 64, 64, 4
        $region16: #{tpu_custom_call.1} parent=11 // pred_fallthru
          _
        // Predicated region
        $region17: #{tpu_custom_call.1} parent=11 // pred_check
          %p209 = pneg %p131
        $region18: #{tpu_custom_call.1} parent=11 // pred_check_branch
          %211 = sbr.rel (%p209) target = $region20
        $region19: #{tpu_custom_call.1} parent=11 // pred_region
          %s213 = ssub.s32 2048, 2048
          %214 = vsyncadd [#allocation7], %s213
          %s215 = sshll.u32 [#allocation9], 4
          %s216 = int_to_ptr.vmem [resolvable:$true] %s215
          %221 = dma.hbm_to_vmem [thread:$0]  %s3, 2048, %s216, [#allocation7], 64, 64, 4
        $region20: #{tpu_custom_call.1} parent=11 // pred_fallthru
          _
        // Predicated region
        $region21: #{tpu_custom_call.1} parent=11 // pred_check
          %p222 = pneg %p152
        $region22: #{tpu_custom_call.1} parent=11 // pred_check_branch
          %224 = sbr.rel (%p222) target = $region24
        $region23: #{tpu_custom_call.1} parent=11 // pred_region
          _
        $region24: #{tpu_custom_call.1} parent=11 // pred_fallthru
          _
      $region12: #{tpu_custom_call.1} parent=5 // pred_fallthru
        _
      %p225 = scmp.lt.s32.totalorder %s18, 2
      // Predicated region
      $region25: #{tpu_custom_call.1} parent=5 // pred_check
        %p226 = pneg %p225
      $region26: #{tpu_custom_call.1} parent=5 // pred_check_branch
        %228 = sbr.rel (%p226) target = $region28
      $region27: #{tpu_custom_call.1} parent=5 // pred_region
        // Predicated region
        $region29: #{tpu_custom_call.1} parent=27 // pred_check
          %p229 = pneg %p52
        $region30: #{tpu_custom_call.1} parent=27 // pred_check_branch
          %231 = sbr.rel (%p229) target = $region32
        $region31: #{tpu_custom_call.1} parent=27 // pred_region
          %s232 = sand.u32 %s18, 1
          %s233 = scalar_lea.sflag [#allocation4], %s232
          %s234 = sand.u32 %s42, 1
          %s235 = smul.addr %s234, 256
          %s236 = scalar_lea.vmem [#allocation3], %s235
          %s237 = smul.u32 8, %s25
          %s238 = smul.u32 4, %s26
          %s240 = ssub.s32 4096, 4096
          %241 = vsyncadd %s233, %s240
          %s242 = smul.addr %s237, 4
          %s243 = sadd.s32 %s238, %s242
          %s244 = smul.addr %s243, 128
          %s245 = scalar_lea.hbm %s0, %s244
          %s246 = sshll.u32 %s236, 4
          %s247 = int_to_ptr.vmem [resolvable:$true] %s246
          %252 = dma.hbm_to_vmem [thread:$0]  %s245, 4096, %s247, %s233, 512, 512, 32
        $region32: #{tpu_custom_call.1} parent=27 // pred_fallthru
          _
        // Predicated region
        $region33: #{tpu_custom_call.1} parent=27 // pred_check
          %p253 = pneg %p104
        $region34: #{tpu_custom_call.1} parent=27 // pred_check_branch
          %255 = sbr.rel (%p253) target = $region36
        $region35: #{tpu_custom_call.1} parent=27 // pred_region
          %s256 = sand.u32 %s18, 1
          %s257 = scalar_lea.sflag [#allocation4], %s256
          %s258 = sand.u32 %s94, 1
          %s259 = smul.addr %s258, 128
          %s260 = scalar_lea.vmem [#allocation8], %s259
          %s261 = smul.u32 32, %s25
          %s263 = ssub.s32 2048, 2048
          %264 = vsyncadd %s257, %s263
          %s265 = smul.addr %s261, 64
          %s266 = scalar_lea.hbm %s2, %s265
          %s267 = sshll.u32 %s260, 4
          %s268 = int_to_ptr.vmem [resolvable:$true] %s267
          %273 = dma.hbm_to_vmem [thread:$0]  %s266, 2048, %s268, %s257, 64, 64, 4
        $region36: #{tpu_custom_call.1} parent=27 // pred_fallthru
          _
      $region28: #{tpu_custom_call.1} parent=5 // pred_fallthru
        _
      %p274 = scmp.le.s32.totalorder 1, %s18
      %p275 = scmp.lt.s32.totalorder %s18, 3
      %p276 = pnand %p274, %p275
      %p277 = pneg %p276
      // Predicated region
      $region37: #{tpu_custom_call.1} parent=5 // pred_check
        _
      $region38: #{tpu_custom_call.1} parent=5 // pred_check_branch
        %279 = sbr.rel (%p276) target = $region40
      $region39: #{tpu_custom_call.1} parent=5 // pred_region
        %s280 = ssub.s32 %s18, 1
        %s281 = sand.u32 %s23, 1
        %s282 = scalar_lea.sflag [#allocation4], %s281
        %s283 = sand.u32 %s45, 1
        %s284 = smul.addr %s283, 256
        %s285 = scalar_lea.vmem [#allocation3], %s284
        // Predicated region
        $region41: #{tpu_custom_call.1} parent=39 // pred_check
          %p286 = pneg %p58
        $region42: #{tpu_custom_call.1} parent=39 // pred_check_branch
          %288 = sbr.rel (%p286) target = $region44
        $region43: #{tpu_custom_call.1} parent=39 // pred_region
          %289 = dma.done %s282, 4096
        $region44: #{tpu_custom_call.1} parent=39 // pred_fallthru
          _
        // Predicated region
        $region45: #{tpu_custom_call.1} parent=39 // pred_check
          %p290 = pneg %p84
        $region46: #{tpu_custom_call.1} parent=39 // pred_check_branch
          %292 = sbr.rel (%p290) target = $region48
        $region47: #{tpu_custom_call.1} parent=39 // pred_region
          %293 = dma.done [#allocation7], 4096
        $region48: #{tpu_custom_call.1} parent=39 // pred_fallthru
          _
        %s294 = sand.u32 %s23, 1
        %s295 = scalar_lea.sflag [#allocation4], %s294
        %s296 = sand.u32 %s97, 1
        %s297 = smul.addr %s296, 128
        %s298 = scalar_lea.vmem [#allocation8], %s297
        // Predicated region
        $region49: #{tpu_custom_call.1} parent=39 // pred_check
          %p299 = pneg %p110
        $region50: #{tpu_custom_call.1} parent=39 // pred_check_branch
          %301 = sbr.rel (%p299) target = $region52
        $region51: #{tpu_custom_call.1} parent=39 // pred_region
          %302 = dma.done %s295, 2048
        $region52: #{tpu_custom_call.1} parent=39 // pred_fallthru
          _
        // Predicated region
        $region53: #{tpu_custom_call.1} parent=39 // pred_check
          %p303 = pneg %p131
        $region54: #{tpu_custom_call.1} parent=39 // pred_check_branch
          %305 = sbr.rel (%p303) target = $region56
        $region55: #{tpu_custom_call.1} parent=39 // pred_region
          %306 = dma.done [#allocation7], 2048
        $region56: #{tpu_custom_call.1} parent=39 // pred_fallthru
          _
        %s307 = sand.u32 %s23, 1
        %s308 = scalar_lea.sflag [#allocation4], %s307
        %s309 = sand.u32 %s45, 1
        %s310 = smul.addr %s309, 256
        %s311 = scalar_lea.vmem [#allocation3], %s310
        %p312 = pneg %p58
        %p313 = pneg %p55
        %p314 = pneg %p84
        %p315 = pneg %p81
        %s316 = sand.u32 %s23, 1
        %s317 = scalar_lea.sflag [#allocation4], %s316
        %s318 = sand.u32 %s97, 1
        %s319 = smul.addr %s318, 128
        %s320 = scalar_lea.vmem [#allocation8], %s319
        %p321 = pneg %p110
        %p322 = pneg %p107
        %p323 = pneg %p131
        %p324 = pneg %p128
        %p325 = pneg %p152
        %p326 = pneg %p149
        %p327 = pneg %p178
        %p328 = pneg %p175
        %s329 = sand.u32 %s165, 1
        %s330 = scalar_lea.sflag [#allocation5], %s329
        %s331 = sand.u32 %s165, 1
        %s332 = smul.addr %s331, 128
        %s333 = scalar_lea.vmem [#allocation10], %s332
        %s334 = smul.u32 8, %s27
        %s335 = smul.u32 4, %s28
        %s336 = smul.u32 64, %s28
        %s337 = smul.u32 32, %s27
        %s338 = smul.u32 32, %s27
        %p340 = scmp.eq.s32.totalorder %s28, 0
        // Predicated region
        $region57: #{tpu_custom_call.1} parent=39 // pred_check
          %p341 = pneg %p340
        $region58: #{tpu_custom_call.1} parent=39 // pred_check_branch
          %343 = sbr.rel (%p341) target = $region60
        $region59: #{tpu_custom_call.1} parent=39 // pred_region
          %344 = vst [vmem:[#allocation2] sm:$0xff] 0.0
          %345 = vst [vmem:[#allocation2 + $0x8] sm:$0xff] 0.0
          %346 = vst [vmem:[#allocation2 + $0x10] sm:$0xff] 0.0
          %347 = vst [vmem:[#allocation2 + $0x18] sm:$0xff] 0.0
          %348 = vst [vmem:[#allocation2 + $0x20] sm:$0xff] 0.0
          %349 = vst [vmem:[#allocation2 + $0x28] sm:$0xff] 0.0
          %350 = vst [vmem:[#allocation2 + $0x30] sm:$0xff] 0.0
          %351 = vst [vmem:[#allocation2 + $0x38] sm:$0xff] 0.0
          %352 = vst [vmem:[#allocation2 + $0x40] sm:$0xff] 0.0
          %353 = vst [vmem:[#allocation2 + $0x48] sm:$0xff] 0.0
          %354 = vst [vmem:[#allocation2 + $0x50] sm:$0xff] 0.0
          %355 = vst [vmem:[#allocation2 + $0x58] sm:$0xff] 0.0
          %356 = vst [vmem:[#allocation2 + $0x60] sm:$0xff] 0.0
          %357 = vst [vmem:[#allocation2 + $0x68] sm:$0xff] 0.0
          %358 = vst [vmem:[#allocation2 + $0x70] sm:$0xff] 0.0
          %359 = vst [vmem:[#allocation2 + $0x78] sm:$0xff] 0.0
          %360 = vst [vmem:[#allocation2 + $0x80] sm:$0xff] 0.0
          %361 = vst [vmem:[#allocation2 + $0x88] sm:$0xff] 0.0
          %362 = vst [vmem:[#allocation2 + $0x90] sm:$0xff] 0.0
          %363 = vst [vmem:[#allocation2 + $0x98] sm:$0xff] 0.0
          %364 = vst [vmem:[#allocation2 + $0xa0] sm:$0xff] 0.0
          %365 = vst [vmem:[#allocation2 + $0xa8] sm:$0xff] 0.0
          %366 = vst [vmem:[#allocation2 + $0xb0] sm:$0xff] 0.0
          %367 = vst [vmem:[#allocation2 + $0xb8] sm:$0xff] 0.0
          %368 = vst [vmem:[#allocation2 + $0xc0] sm:$0xff] 0.0
          %369 = vst [vmem:[#allocation2 + $0xc8] sm:$0xff] 0.0
          %370 = vst [vmem:[#allocation2 + $0xd0] sm:$0xff] 0.0
          %371 = vst [vmem:[#allocation2 + $0xd8] sm:$0xff] 0.0
          %372 = vst [vmem:[#allocation2 + $0xe0] sm:$0xff] 0.0
          %373 = vst [vmem:[#allocation2 + $0xe8] sm:$0xff] 0.0
          %374 = vst [vmem:[#allocation2 + $0xf0] sm:$0xff] 0.0
          %375 = vst [vmem:[#allocation2 + $0xf8] sm:$0xff] 0.0
        $region60: #{tpu_custom_call.1} parent=39 // pred_fallthru
          _
        %v376 = vld [vmem:[%s285] sm:$0xff]
        %v377 = vld [vmem:[%s285 + $0x8] sm:$0xff]
        %v378 = vld [vmem:[%s285 + $0x10] sm:$0xff]
        %v379 = vld [vmem:[%s285 + $0x18] sm:$0xff]
        %v380 = vld [vmem:[%s285 + $0x20] sm:$0xff]
        %v381 = vld [vmem:[%s285 + $0x28] sm:$0xff]
        %v382 = vld [vmem:[%s285 + $0x30] sm:$0xff]
        %v383 = vld [vmem:[%s285 + $0x38] sm:$0xff]
        %v384 = vld [vmem:[%s285 + $0x40] sm:$0xff]
        %v385 = vld [vmem:[%s285 + $0x48] sm:$0xff]
        %v386 = vld [vmem:[%s285 + $0x50] sm:$0xff]
        %v387 = vld [vmem:[%s285 + $0x58] sm:$0xff]
        %v388 = vld [vmem:[%s285 + $0x60] sm:$0xff]
        %v389 = vld [vmem:[%s285 + $0x68] sm:$0xff]
        %v390 = vld [vmem:[%s285 + $0x70] sm:$0xff]
        %v391 = vld [vmem:[%s285 + $0x78] sm:$0xff]
        %v392 = vld [vmem:[%s285 + $0x80] sm:$0xff]
        %v393 = vld [vmem:[%s285 + $0x88] sm:$0xff]
        %v394 = vld [vmem:[%s285 + $0x90] sm:$0xff]
        %v395 = vld [vmem:[%s285 + $0x98] sm:$0xff]
        %v396 = vld [vmem:[%s285 + $0xa0] sm:$0xff]
        %v397 = vld [vmem:[%s285 + $0xa8] sm:$0xff]
        %v398 = vld [vmem:[%s285 + $0xb0] sm:$0xff]
        %v399 = vld [vmem:[%s285 + $0xb8] sm:$0xff]
        %v400 = vld [vmem:[%s285 + $0xc0] sm:$0xff]
        %v401 = vld [vmem:[%s285 + $0xc8] sm:$0xff]
        %v402 = vld [vmem:[%s285 + $0xd0] sm:$0xff]
        %v403 = vld [vmem:[%s285 + $0xd8] sm:$0xff]
        %v404 = vld [vmem:[%s285 + $0xe0] sm:$0xff]
        %v405 = vld [vmem:[%s285 + $0xe8] sm:$0xff]
        %v406 = vld [vmem:[%s285 + $0xf0] sm:$0xff]
        %v407 = vld [vmem:[%s285 + $0xf8] sm:$0xff]
        %v408 = vunpack.c.l.s8.bf16 %v376
        %v409 = vunpack.c.l.s8.bf16 %v377
        %v410 = vunpack.c.l.s8.bf16 %v378
        %v411 = vunpack.c.l.s8.bf16 %v379
        %v412 = vunpack.c.h.s8.bf16 %v376
        %v413 = vunpack.c.h.s8.bf16 %v377
        %v414 = vunpack.c.h.s8.bf16 %v378
        %v415 = vunpack.c.h.s8.bf16 %v379
        %v416 = vunpack.c.l.s8.bf16 %v380
        %v417 = vunpack.c.l.s8.bf16 %v381
        %v418 = vunpack.c.l.s8.bf16 %v382
        %v419 = vunpack.c.l.s8.bf16 %v383
        %v420 = vunpack.c.h.s8.bf16 %v380
        %v421 = vunpack.c.h.s8.bf16 %v381
        %v422 = vunpack.c.h.s8.bf16 %v382
        %v423 = vunpack.c.h.s8.bf16 %v383
        %v424 = vunpack.c.l.s8.bf16 %v384
        %v425 = vunpack.c.l.s8.bf16 %v385
        %v426 = vunpack.c.l.s8.bf16 %v386
        %v427 = vunpack.c.l.s8.bf16 %v387
        %v428 = vunpack.c.h.s8.bf16 %v384
        %v429 = vunpack.c.h.s8.bf16 %v385
        %v430 = vunpack.c.h.s8.bf16 %v386
        %v431 = vunpack.c.h.s8.bf16 %v387
        %v432 = vunpack.c.l.s8.bf16 %v388
        %v433 = vunpack.c.l.s8.bf16 %v389
        %v434 = vunpack.c.l.s8.bf16 %v390
        %v435 = vunpack.c.l.s8.bf16 %v391
        %v436 = vunpack.c.h.s8.bf16 %v388
        %v437 = vunpack.c.h.s8.bf16 %v389
        %v438 = vunpack.c.h.s8.bf16 %v390
        %v439 = vunpack.c.h.s8.bf16 %v391
        %v440 = vunpack.c.l.s8.bf16 %v392
        %v441 = vunpack.c.l.s8.bf16 %v393
        %v442 = vunpack.c.l.s8.bf16 %v394
        %v443 = vunpack.c.l.s8.bf16 %v395
        %v444 = vunpack.c.h.s8.bf16 %v392
        %v445 = vunpack.c.h.s8.bf16 %v393
        %v446 = vunpack.c.h.s8.bf16 %v394
        %v447 = vunpack.c.h.s8.bf16 %v395
        %v448 = vunpack.c.l.s8.bf16 %v396
        %v449 = vunpack.c.l.s8.bf16 %v397
        %v450 = vunpack.c.l.s8.bf16 %v398
        %v451 = vunpack.c.l.s8.bf16 %v399
        %v452 = vunpack.c.h.s8.bf16 %v396
        %v453 = vunpack.c.h.s8.bf16 %v397
        %v454 = vunpack.c.h.s8.bf16 %v398
        %v455 = vunpack.c.h.s8.bf16 %v399
        %v456 = vunpack.c.l.s8.bf16 %v400
        %v457 = vunpack.c.l.s8.bf16 %v401
        %v458 = vunpack.c.l.s8.bf16 %v402
        %v459 = vunpack.c.l.s8.bf16 %v403
        %v460 = vunpack.c.h.s8.bf16 %v400
        %v461 = vunpack.c.h.s8.bf16 %v401
        %v462 = vunpack.c.h.s8.bf16 %v402
        %v463 = vunpack.c.h.s8.bf16 %v403
        %v464 = vunpack.c.l.s8.bf16 %v404
        %v465 = vunpack.c.l.s8.bf16 %v405
        %v466 = vunpack.c.l.s8.bf16 %v406
        %v467 = vunpack.c.l.s8.bf16 %v407
        %v468 = vunpack.c.h.s8.bf16 %v404
        %v469 = vunpack.c.h.s8.bf16 %v405
        %v470 = vunpack.c.h.s8.bf16 %v406
        %v471 = vunpack.c.h.s8.bf16 %v407
        %v472 = vld [vmem:[#allocation2] sm:$0xff]
        %v473 = vld [vmem:[#allocation2 + $0x8] sm:$0xff]
        %v474 = vld [vmem:[#allocation2 + $0x10] sm:$0xff]
        %v475 = vld [vmem:[#allocation2 + $0x18] sm:$0xff]
        %v476 = vld [vmem:[#allocation2 + $0x20] sm:$0xff]
        %v477 = vld [vmem:[#allocation2 + $0x28] sm:$0xff]
        %v478 = vld [vmem:[#allocation2 + $0x30] sm:$0xff]
        %v479 = vld [vmem:[#allocation2 + $0x38] sm:$0xff]
        %v480 = vld [vmem:[#allocation2 + $0x40] sm:$0xff]
        %v481 = vld [vmem:[#allocation2 + $0x48] sm:$0xff]
        %v482 = vld [vmem:[#allocation2 + $0x50] sm:$0xff]
        %v483 = vld [vmem:[#allocation2 + $0x58] sm:$0xff]
        %v484 = vld [vmem:[#allocation2 + $0x60] sm:$0xff]
        %v485 = vld [vmem:[#allocation2 + $0x68] sm:$0xff]
        %v486 = vld [vmem:[#allocation2 + $0x70] sm:$0xff]
        %v487 = vld [vmem:[#allocation2 + $0x78] sm:$0xff]
        %v488 = vld [vmem:[#allocation2 + $0x80] sm:$0xff]
        %v489 = vld [vmem:[#allocation2 + $0x88] sm:$0xff]
        %v490 = vld [vmem:[#allocation2 + $0x90] sm:$0xff]
        %v491 = vld [vmem:[#allocation2 + $0x98] sm:$0xff]
        %v492 = vld [vmem:[#allocation2 + $0xa0] sm:$0xff]
        %v493 = vld [vmem:[#allocation2 + $0xa8] sm:$0xff]
        %v494 = vld [vmem:[#allocation2 + $0xb0] sm:$0xff]
        %v495 = vld [vmem:[#allocation2 + $0xb8] sm:$0xff]
        %v496 = vld [vmem:[#allocation2 + $0xc0] sm:$0xff]
        %v497 = vld [vmem:[#allocation2 + $0xc8] sm:$0xff]
        %v498 = vld [vmem:[#allocation2 + $0xd0] sm:$0xff]
        %v499 = vld [vmem:[#allocation2 + $0xd8] sm:$0xff]
        %v500 = vld [vmem:[#allocation2 + $0xe0] sm:$0xff]
        %v501 = vld [vmem:[#allocation2 + $0xe8] sm:$0xff]
        %v502 = vld [vmem:[#allocation2 + $0xf0] sm:$0xff]
        %v503 = vld [vmem:[#allocation2 + $0xf8] sm:$0xff]
        %v504 = vld [vmem:[#allocation6] sm:$0xf]
        %v505 = vld [vmem:[#allocation6 + $0x4] sm:$0xf]
        %v506 = vld [vmem:[#allocation6 + $0x8] sm:$0xf]
        %v507 = vld [vmem:[#allocation6 + $0xc] sm:$0xf]
        %v508 = vld [vmem:[#allocation6 + $0x10] sm:$0xf]
        %v509 = vld [vmem:[#allocation6 + $0x14] sm:$0xf]
        %v510 = vld [vmem:[#allocation6 + $0x18] sm:$0xf]
        %v511 = vld [vmem:[#allocation6 + $0x1c] sm:$0xf]
        %v512 = vld [vmem:[#allocation6 + $0x20] sm:$0xf]
        %v513 = vld [vmem:[#allocation6 + $0x24] sm:$0xf]
        %v514 = vld [vmem:[#allocation6 + $0x28] sm:$0xf]
        %v515 = vld [vmem:[#allocation6 + $0x2c] sm:$0xf]
        %v516 = vld [vmem:[#allocation6 + $0x30] sm:$0xf]
        %v517 = vld [vmem:[#allocation6 + $0x34] sm:$0xf]
        %v518 = vld [vmem:[#allocation6 + $0x38] sm:$0xf]
        %v519 = vld [vmem:[#allocation6 + $0x3c] sm:$0xf]
        %v520 = vld [vmem:[#allocation6 + $0x40] sm:$0xf]
        %v521 = vld [vmem:[#allocation6 + $0x44] sm:$0xf]
        %v522 = vld [vmem:[#allocation6 + $0x48] sm:$0xf]
        %v523 = vld [vmem:[#allocation6 + $0x4c] sm:$0xf]
        %v524 = vld [vmem:[#allocation6 + $0x50] sm:$0xf]
        %v525 = vld [vmem:[#allocation6 + $0x54] sm:$0xf]
        %v526 = vld [vmem:[#allocation6 + $0x58] sm:$0xf]
        %v527 = vld [vmem:[#allocation6 + $0x5c] sm:$0xf]
        %v528 = vld [vmem:[#allocation6 + $0x60] sm:$0xf]
        %v529 = vld [vmem:[#allocation6 + $0x64] sm:$0xf]
        %v530 = vld [vmem:[#allocation6 + $0x68] sm:$0xf]
        %v531 = vld [vmem:[#allocation6 + $0x6c] sm:$0xf]
        %v532 = vld [vmem:[#allocation6 + $0x70] sm:$0xf]
        %v533 = vld [vmem:[#allocation6 + $0x74] sm:$0xf]
        %v534 = vld [vmem:[#allocation6 + $0x78] sm:$0xf]
        %v535 = vld [vmem:[#allocation6 + $0x7c] sm:$0xf]
        %v536 = vld [vmem:[#allocation6 + $0x80] sm:$0xf]
        %v537 = vld [vmem:[#allocation6 + $0x84] sm:$0xf]
        %v538 = vld [vmem:[#allocation6 + $0x88] sm:$0xf]
        %v539 = vld [vmem:[#allocation6 + $0x8c] sm:$0xf]
        %v540 = vld [vmem:[#allocation6 + $0x90] sm:$0xf]
        %v541 = vld [vmem:[#allocation6 + $0x94] sm:$0xf]
        %v542 = vld [vmem:[#allocation6 + $0x98] sm:$0xf]
        %v543 = vld [vmem:[#allocation6 + $0x9c] sm:$0xf]
        %v544 = vld [vmem:[#allocation6 + $0xa0] sm:$0xf]
        %v545 = vld [vmem:[#allocation6 + $0xa4] sm:$0xf]
        %v546 = vld [vmem:[#allocation6 + $0xa8] sm:$0xf]
        %v547 = vld [vmem:[#allocation6 + $0xac] sm:$0xf]
        %v548 = vld [vmem:[#allocation6 + $0xb0] sm:$0xf]
        %v549 = vld [vmem:[#allocation6 + $0xb4] sm:$0xf]
        %v550 = vld [vmem:[#allocation6 + $0xb8] sm:$0xf]
        %v551 = vld [vmem:[#allocation6 + $0xbc] sm:$0xf]
        %v552 = vld [vmem:[#allocation6 + $0xc0] sm:$0xf]
        %v553 = vld [vmem:[#allocation6 + $0xc4] sm:$0xf]
        %v554 = vld [vmem:[#allocation6 + $0xc8] sm:$0xf]
        %v555 = vld [vmem:[#allocation6 + $0xcc] sm:$0xf]
        %v556 = vld [vmem:[#allocation6 + $0xd0] sm:$0xf]
        %v557 = vld [vmem:[#allocation6 + $0xd4] sm:$0xf]
        %v558 = vld [vmem:[#allocation6 + $0xd8] sm:$0xf]
        %v559 = vld [vmem:[#allocation6 + $0xdc] sm:$0xf]
        %v560 = vld [vmem:[#allocation6 + $0xe0] sm:$0xf]
        %v561 = vld [vmem:[#allocation6 + $0xe4] sm:$0xf]
        %v562 = vld [vmem:[#allocation6 + $0xe8] sm:$0xf]
        %v563 = vld [vmem:[#allocation6 + $0xec] sm:$0xf]
        %v564 = vld [vmem:[#allocation6 + $0xf0] sm:$0xf]
        %v565 = vld [vmem:[#allocation6 + $0xf4] sm:$0xf]
        %v566 = vld [vmem:[#allocation6 + $0xf8] sm:$0xf]
        %v567 = vld [vmem:[#allocation6 + $0xfc] sm:$0xf]
        %v632 = vunpack.c.l.b16 %v504
        %v633 = vunpack.c.l.b16 %v505
        %v634 = vunpack.c.l.b16 %v506
        %v635 = vunpack.c.l.b16 %v507
        %v636 = vunpack.c.l.b16 %v508
        %v637 = vunpack.c.l.b16 %v509
        %v638 = vunpack.c.l.b16 %v510
        %v639 = vunpack.c.l.b16 %v511
        %v640 = vunpack.c.l.b16 %v512
        %v641 = vunpack.c.l.b16 %v513
        %v642 = vunpack.c.l.b16 %v514
        %v643 = vunpack.c.l.b16 %v515
        %v644 = vunpack.c.l.b16 %v516
        %v645 = vunpack.c.l.b16 %v517
        %v646 = vunpack.c.l.b16 %v518
        %v647 = vunpack.c.l.b16 %v519
        %v648 = vunpack.c.l.b16 %v520
        %v649 = vunpack.c.l.b16 %v521
        %v650 = vunpack.c.l.b16 %v522
        %v651 = vunpack.c.l.b16 %v523
        %v652 = vunpack.c.l.b16 %v524
        %v653 = vunpack.c.l.b16 %v525
        %v654 = vunpack.c.l.b16 %v526
        %v655 = vunpack.c.l.b16 %v527
        %v656 = vunpack.c.l.b16 %v528
        %v657 = vunpack.c.l.b16 %v529
        %v658 = vunpack.c.l.b16 %v530
        %v659 = vunpack.c.l.b16 %v531
        %v660 = vunpack.c.l.b16 %v532
        %v661 = vunpack.c.l.b16 %v533
        %v662 = vunpack.c.l.b16 %v534
        %v663 = vunpack.c.l.b16 %v535
        %v664 = vunpack.c.l.b16 %v536
        %v665 = vunpack.c.l.b16 %v537
        %v666 = vunpack.c.l.b16 %v538
        %v667 = vunpack.c.l.b16 %v539
        %v668 = vunpack.c.l.b16 %v540
        %v669 = vunpack.c.l.b16 %v541
        %v670 = vunpack.c.l.b16 %v542
        %v671 = vunpack.c.l.b16 %v543
        %v672 = vunpack.c.l.b16 %v544
        %v673 = vunpack.c.l.b16 %v545
        %v674 = vunpack.c.l.b16 %v546
        %v675 = vunpack.c.l.b16 %v547
        %v676 = vunpack.c.l.b16 %v548
        %v677 = vunpack.c.l.b16 %v549
        %v678 = vunpack.c.l.b16 %v550
        %v679 = vunpack.c.l.b16 %v551
        %v680 = vunpack.c.l.b16 %v552
        %v681 = vunpack.c.l.b16 %v553
        %v682 = vunpack.c.l.b16 %v554
        %v683 = vunpack.c.l.b16 %v555
        %v684 = vunpack.c.l.b16 %v556
        %v685 = vunpack.c.l.b16 %v557
        %v686 = vunpack.c.l.b16 %v558
        %v687 = vunpack.c.l.b16 %v559
        %v688 = vunpack.c.l.b16 %v560
        %v689 = vunpack.c.l.b16 %v561
        %v690 = vunpack.c.l.b16 %v562
        %v691 = vunpack.c.l.b16 %v563
        %v692 = vunpack.c.l.b16 %v564
        %v693 = vunpack.c.l.b16 %v565
        %v694 = vunpack.c.l.b16 %v566
        %v695 = vunpack.c.l.b16 %v567
        %v696 = vpack.c.b16 %v633, %v632
        %v697 = vpack.c.b16 %v635, %v634
        %v698 = vpack.c.b16 %v637, %v636
        %v699 = vpack.c.b16 %v639, %v638
        %v700 = vpack.c.b16 %v641, %v640
        %v701 = vpack.c.b16 %v643, %v642
        %v702 = vpack.c.b16 %v645, %v644
        %v703 = vpack.c.b16 %v647, %v646
        %v704 = vpack.c.b16 %v649, %v648
        %v705 = vpack.c.b16 %v651, %v650
        %v706 = vpack.c.b16 %v653, %v652
        %v707 = vpack.c.b16 %v655, %v654
        %v708 = vpack.c.b16 %v657, %v656
        %v709 = vpack.c.b16 %v659, %v658
        %v710 = vpack.c.b16 %v661, %v660
        %v711 = vpack.c.b16 %v663, %v662
        %v712 = vpack.c.b16 %v665, %v664
        %v713 = vpack.c.b16 %v667, %v666
        %v714 = vpack.c.b16 %v669, %v668
        %v715 = vpack.c.b16 %v671, %v670
        %v716 = vpack.c.b16 %v673, %v672
        %v717 = vpack.c.b16 %v675, %v674
        %v718 = vpack.c.b16 %v677, %v676
        %v719 = vpack.c.b16 %v679, %v678
        %v720 = vpack.c.b16 %v681, %v680
        %v721 = vpack.c.b16 %v683, %v682
        %v722 = vpack.c.b16 %v685, %v684
        %v723 = vpack.c.b16 %v687, %v686
        %v724 = vpack.c.b16 %v689, %v688
        %v725 = vpack.c.b16 %v691, %v690
        %v726 = vpack.c.b16 %v693, %v692
        %v727 = vpack.c.b16 %v695, %v694
        %760 = vmatprep.subr.bf16.mxu0 0
        %761 = vmatpush1.bf16.msra.mxu0 %v703
        %762 = vmatprep.subr.bf16.mxu0 0
        %763 = vmatpush1.bf16.msra.mxu0 %v702
        %764 = vmatprep.subr.bf16.mxu0 0
        %765 = vmatpush1.bf16.msra.mxu0 %v701
        %766 = vmatprep.subr.bf16.mxu0 0
        %767 = vmatpush1.bf16.msra.mxu0 %v700
        %768 = vmatprep.subr.bf16.mxu0 0
        %769 = vmatpush1.bf16.msra.mxu0 %v699
        %770 = vmatprep.subr.bf16.mxu0 0
        %771 = vmatpush1.bf16.msra.mxu0 %v698
        %772 = vmatprep.subr.bf16.mxu0 0
        %773 = vmatpush1.bf16.msra.mxu0 %v697
        %774 = vmatprep.subr.bf16.mxu0 0
        %775 = vmatpush1.bf16.msra.mxu0 %v696
        %776 = vmatprep.subr.bf16.mxu0 0
        %777 = vmatpush2.bf16.msra.mxu0 %v711
        %778 = vmatprep.subr.bf16.mxu0 0
        %779 = vmatpush2.bf16.msra.mxu0 %v710
        %780 = vmatprep.subr.bf16.mxu0 0
        %781 = vmatpush2.bf16.msra.mxu0 %v709
        %782 = vmatprep.subr.bf16.mxu0 0
        %783 = vmatpush2.bf16.msra.mxu0 %v708
        %784 = vmatprep.subr.bf16.mxu0 0
        %785 = vmatpush2.bf16.msra.mxu0 %v707
        %786 = vmatprep.subr.bf16.mxu0 0
        %787 = vmatpush2.bf16.msra.mxu0 %v706
        %788 = vmatprep.subr.bf16.mxu0 0
        %789 = vmatpush2.bf16.msra.mxu0 %v705
        %790 = vmatprep.subr.bf16.mxu0 0
        %791 = vmatpush2.bf16.msra.mxu0 %v704
        %792 = vmatprep.mubr.bf16.mxu0 %v409
        %793 = vmatmul.mubr.bf16.gmra.mxu0 %v408
        %v794 = vpop.f32.mrf.mxu0
        %v795 = vadd.f32 0.0, %v794
        %v796 = vpop.f32.mrf.mxu0
        %v797 = vpop.f32.mrf.mxu0
        %v798 = vadd.f32 0.0, %v797
        %v799 = vpop.f32.mrf.mxu0
        %800 = vmatprep.mubr.bf16.mxu0 %v413
        %801 = vmatmul.mubr.bf16.gmra.mxu0 %v412
        %v802 = vpop.f32.mrf.mxu0
        %v803 = vadd.f32 0.0, %v802
        %v804 = vpop.f32.mrf.mxu0
        %v805 = vpop.f32.mrf.mxu0
        %v806 = vadd.f32 0.0, %v805
        %v807 = vpop.f32.mrf.mxu0
        %808 = vmatprep.mubr.bf16.mxu0 %v417
        %809 = vmatmul.mubr.bf16.gmra.mxu0 %v416
        %v810 = vpop.f32.mrf.mxu0
        %v811 = vadd.f32 0.0, %v810
        %v812 = vpop.f32.mrf.mxu0
        %v813 = vpop.f32.mrf.mxu0
        %v814 = vadd.f32 0.0, %v813
        %v815 = vpop.f32.mrf.mxu0
        %816 = vmatprep.mubr.bf16.mxu0 %v421
        %817 = vmatmul.mubr.bf16.gmra.mxu0 %v420
        %v818 = vpop.f32.mrf.mxu0
        %v819 = vadd.f32 0.0, %v818
        %v820 = vpop.f32.mrf.mxu0
        %v821 = vpop.f32.mrf.mxu0
        %v822 = vadd.f32 0.0, %v821
        %v823 = vpop.f32.mrf.mxu0
        %824 = vmatprep.mubr.bf16.mxu0 %v425
        %825 = vmatmul.mubr.bf16.gmra.mxu0 %v424
        %v826 = vpop.f32.mrf.mxu0
        %v827 = vadd.f32 0.0, %v826
        %v828 = vpop.f32.mrf.mxu0
        %v829 = vpop.f32.mrf.mxu0
        %v830 = vadd.f32 0.0, %v829
        %v831 = vpop.f32.mrf.mxu0
        %832 = vmatprep.mubr.bf16.mxu0 %v429
        %833 = vmatmul.mubr.bf16.gmra.mxu0 %v428
        %v834 = vpop.f32.mrf.mxu0
        %v835 = vadd.f32 0.0, %v834
        %v836 = vpop.f32.mrf.mxu0
        %v837 = vpop.f32.mrf.mxu0
        %v838 = vadd.f32 0.0, %v837
        %v839 = vpop.f32.mrf.mxu0
        %840 = vmatprep.mubr.bf16.mxu0 %v433
        %841 = vmatmul.mubr.bf16.gmra.mxu0 %v432
        %v842 = vpop.f32.mrf.mxu0
        %v843 = vadd.f32 0.0, %v842
        %v844 = vpop.f32.mrf.mxu0
        %v845 = vpop.f32.mrf.mxu0
        %v846 = vadd.f32 0.0, %v845
        %v847 = vpop.f32.mrf.mxu0
        %848 = vmatprep.mubr.bf16.mxu0 %v437
        %849 = vmatmul.mubr.bf16.gmra.mxu0 %v436
        %v850 = vpop.f32.mrf.mxu0
        %v851 = vadd.f32 0.0, %v850
        %v852 = vpop.f32.mrf.mxu0
        %v853 = vpop.f32.mrf.mxu0
        %v854 = vadd.f32 0.0, %v853
        %v855 = vpop.f32.mrf.mxu0
        %856 = vmatprep.mubr.bf16.mxu0 %v441
        %857 = vmatmul.mubr.bf16.gmra.mxu0 %v440
        %v858 = vpop.f32.mrf.mxu0
        %v859 = vadd.f32 0.0, %v858
        %v860 = vpop.f32.mrf.mxu0
        %v861 = vpop.f32.mrf.mxu0
        %v862 = vadd.f32 0.0, %v861
        %v863 = vpop.f32.mrf.mxu0
        %864 = vmatprep.mubr.bf16.mxu0 %v445
        %865 = vmatmul.mubr.bf16.gmra.mxu0 %v444
        %v866 = vpop.f32.mrf.mxu0
        %v867 = vadd.f32 0.0, %v866
        %v868 = vpop.f32.mrf.mxu0
        %v869 = vpop.f32.mrf.mxu0
        %v870 = vadd.f32 0.0, %v869
        %v871 = vpop.f32.mrf.mxu0
        %872 = vmatprep.mubr.bf16.mxu0 %v449
        %873 = vmatmul.mubr.bf16.gmra.mxu0 %v448
        %v874 = vpop.f32.mrf.mxu0
        %v875 = vadd.f32 0.0, %v874
        %v876 = vpop.f32.mrf.mxu0
        %v877 = vpop.f32.mrf.mxu0
        %v878 = vadd.f32 0.0, %v877
        %v879 = vpop.f32.mrf.mxu0
        %880 = vmatprep.mubr.bf16.mxu0 %v453
        %881 = vmatmul.mubr.bf16.gmra.mxu0 %v452
        %v882 = vpop.f32.mrf.mxu0
        %v883 = vadd.f32 0.0, %v882
        %v884 = vpop.f32.mrf.mxu0
        %v885 = vpop.f32.mrf.mxu0
        %v886 = vadd.f32 0.0, %v885
        %v887 = vpop.f32.mrf.mxu0
        %888 = vmatprep.mubr.bf16.mxu0 %v457
        %889 = vmatmul.mubr.bf16.gmra.mxu0 %v456
        %v890 = vpop.f32.mrf.mxu0
        %v891 = vadd.f32 0.0, %v890
        %v892 = vpop.f32.mrf.mxu0
        %v893 = vpop.f32.mrf.mxu0
        %v894 = vadd.f32 0.0, %v893
        %v895 = vpop.f32.mrf.mxu0
        %896 = vmatprep.mubr.bf16.mxu0 %v461
        %897 = vmatmul.mubr.bf16.gmra.mxu0 %v460
        %v898 = vpop.f32.mrf.mxu0
        %v899 = vadd.f32 0.0, %v898
        %v900 = vpop.f32.mrf.mxu0
        %v901 = vpop.f32.mrf.mxu0
        %v902 = vadd.f32 0.0, %v901
        %v903 = vpop.f32.mrf.mxu0
        %904 = vmatprep.mubr.bf16.mxu0 %v465
        %905 = vmatmul.mubr.bf16.gmra.mxu0 %v464
        %v906 = vpop.f32.mrf.mxu0
        %v907 = vadd.f32 0.0, %v906
        %v908 = vpop.f32.mrf.mxu0
        %v909 = vpop.f32.mrf.mxu0
        %v910 = vadd.f32 0.0, %v909
        %v911 = vpop.f32.mrf.mxu0
        %912 = vmatprep.mubr.bf16.mxu0 %v469
        %913 = vmatmul.mubr.bf16.gmra.mxu0 %v468
        %v914 = vpop.f32.mrf.mxu0
        %v915 = vadd.f32 0.0, %v914
        %v916 = vpop.f32.mrf.mxu0
        %v917 = vpop.f32.mrf.mxu0
        %v918 = vadd.f32 0.0, %v917
        %v919 = vpop.f32.mrf.mxu0
        %920 = vdwg.mxu0
        %921 = vmatprep.subr.bf16.mxu0 0
        %922 = vmatpush1.bf16.msra.mxu0 %v719
        %923 = vmatprep.subr.bf16.mxu0 0
        %924 = vmatpush1.bf16.msra.mxu0 %v718
        %925 = vmatprep.subr.bf16.mxu0 0
        %926 = vmatpush1.bf16.msra.mxu0 %v717
        %927 = vmatprep.subr.bf16.mxu0 0
        %928 = vmatpush1.bf16.msra.mxu0 %v716
        %929 = vmatprep.subr.bf16.mxu0 0
        %930 = vmatpush1.bf16.msra.mxu0 %v715
        %931 = vmatprep.subr.bf16.mxu0 0
        %932 = vmatpush1.bf16.msra.mxu0 %v714
        %933 = vmatprep.subr.bf16.mxu0 0
        %934 = vmatpush1.bf16.msra.mxu0 %v713
        %935 = vmatprep.subr.bf16.mxu0 0
        %936 = vmatpush1.bf16.msra.mxu0 %v712
        %937 = vmatprep.subr.bf16.mxu0 0
        %938 = vmatpush2.bf16.msra.mxu0 %v727
        %939 = vmatprep.subr.bf16.mxu0 0
        %940 = vmatpush2.bf16.msra.mxu0 %v726
        %941 = vmatprep.subr.bf16.mxu0 0
        %942 = vmatpush2.bf16.msra.mxu0 %v725
        %943 = vmatprep.subr.bf16.mxu0 0
        %944 = vmatpush2.bf16.msra.mxu0 %v724
        %945 = vmatprep.subr.bf16.mxu0 0
        %946 = vmatpush2.bf16.msra.mxu0 %v723
        %947 = vmatprep.subr.bf16.mxu0 0
        %948 = vmatpush2.bf16.msra.mxu0 %v722
        %949 = vmatprep.subr.bf16.mxu0 0
        %950 = vmatpush2.bf16.msra.mxu0 %v721
        %951 = vmatprep.subr.bf16.mxu0 0
        %952 = vmatpush2.bf16.msra.mxu0 %v720
        %953 = vmatprep.mubr.bf16.mxu0 %v411
        %954 = vmatmul.mubr.bf16.gmra.mxu0 %v410
        %v955 = vpop.f32.mrf.mxu0
        %v956 = vadd.f32 %v795, %v955
        %v957 = vpop.f32.mrf.mxu0
        %v958 = vpop.f32.mrf.mxu0
        %v959 = vadd.f32 %v798, %v958
        %v960 = vpop.f32.mrf.mxu0
        %961 = vmatprep.mubr.bf16.mxu0 %v415
        %962 = vmatmul.mubr.bf16.gmra.mxu0 %v414
        %v963 = vpop.f32.mrf.mxu0
        %v964 = vadd.f32 %v803, %v963
        %v965 = vpop.f32.mrf.mxu0
        %v966 = vpop.f32.mrf.mxu0
        %v967 = vadd.f32 %v806, %v966
        %v968 = vpop.f32.mrf.mxu0
        %969 = vmatprep.mubr.bf16.mxu0 %v419
        %970 = vmatmul.mubr.bf16.gmra.mxu0 %v418
        %v971 = vpop.f32.mrf.mxu0
        %v972 = vadd.f32 %v811, %v971
        %v973 = vpop.f32.mrf.mxu0
        %v974 = vpop.f32.mrf.mxu0
        %v975 = vadd.f32 %v814, %v974
        %v976 = vpop.f32.mrf.mxu0
        %977 = vmatprep.mubr.bf16.mxu0 %v423
        %978 = vmatmul.mubr.bf16.gmra.mxu0 %v422
        %v979 = vpop.f32.mrf.mxu0
        %v980 = vadd.f32 %v819, %v979
        %v981 = vpop.f32.mrf.mxu0
        %v982 = vpop.f32.mrf.mxu0
        %v983 = vadd.f32 %v822, %v982
        %v984 = vpop.f32.mrf.mxu0
        %985 = vmatprep.mubr.bf16.mxu0 %v427
        %986 = vmatmul.mubr.bf16.gmra.mxu0 %v426
        %v987 = vpop.f32.mrf.mxu0
        %v988 = vadd.f32 %v827, %v987
        %v989 = vpop.f32.mrf.mxu0
        %v990 = vpop.f32.mrf.mxu0
        %v991 = vadd.f32 %v830, %v990
        %v992 = vpop.f32.mrf.mxu0
        %993 = vmatprep.mubr.bf16.mxu0 %v431
        %994 = vmatmul.mubr.bf16.gmra.mxu0 %v430
        %v995 = vpop.f32.mrf.mxu0
        %v996 = vadd.f32 %v835, %v995
        %v997 = vpop.f32.mrf.mxu0
        %v998 = vpop.f32.mrf.mxu0
        %v999 = vadd.f32 %v838, %v998
        %v1000 = vpop.f32.mrf.mxu0
        %1001 = vmatprep.mubr.bf16.mxu0 %v435
        %1002 = vmatmul.mubr.bf16.gmra.mxu0 %v434
        %v1003 = vpop.f32.mrf.mxu0
        %v1004 = vadd.f32 %v843, %v1003
        %v1005 = vpop.f32.mrf.mxu0
        %v1006 = vpop.f32.mrf.mxu0
        %v1007 = vadd.f32 %v846, %v1006
        %v1008 = vpop.f32.mrf.mxu0
        %1009 = vmatprep.mubr.bf16.mxu0 %v439
        %1010 = vmatmul.mubr.bf16.gmra.mxu0 %v438
        %v1011 = vpop.f32.mrf.mxu0
        %v1012 = vadd.f32 %v851, %v1011
        %v1013 = vpop.f32.mrf.mxu0
        %v1014 = vpop.f32.mrf.mxu0
        %v1015 = vadd.f32 %v854, %v1014
        %v1016 = vpop.f32.mrf.mxu0
        %1017 = vmatprep.mubr.bf16.mxu0 %v443
        %1018 = vmatmul.mubr.bf16.gmra.mxu0 %v442
        %v1019 = vpop.f32.mrf.mxu0
        %v1020 = vadd.f32 %v859, %v1019
        %v1021 = vpop.f32.mrf.mxu0
        %v1022 = vpop.f32.mrf.mxu0
        %v1023 = vadd.f32 %v862, %v1022
        %v1024 = vpop.f32.mrf.mxu0
        %1025 = vmatprep.mubr.bf16.mxu0 %v447
        %1026 = vmatmul.mubr.bf16.gmra.mxu0 %v446
        %v1027 = vpop.f32.mrf.mxu0
        %v1028 = vadd.f32 %v867, %v1027
        %v1029 = vpop.f32.mrf.mxu0
        %v1030 = vpop.f32.mrf.mxu0
        %v1031 = vadd.f32 %v870, %v1030
        %v1032 = vpop.f32.mrf.mxu0
        %1033 = vmatprep.mubr.bf16.mxu0 %v451
        %1034 = vmatmul.mubr.bf16.gmra.mxu0 %v450
        %v1035 = vpop.f32.mrf.mxu0
        %v1036 = vadd.f32 %v875, %v1035
        %v1037 = vpop.f32.mrf.mxu0
        %v1038 = vpop.f32.mrf.mxu0
        %v1039 = vadd.f32 %v878, %v1038
        %v1040 = vpop.f32.mrf.mxu0
        %1041 = vmatprep.mubr.bf16.mxu0 %v455
        %1042 = vmatmul.mubr.bf16.gmra.mxu0 %v454
        %v1043 = vpop.f32.mrf.mxu0
        %v1044 = vadd.f32 %v883, %v1043
        %v1045 = vpop.f32.mrf.mxu0
        %v1046 = vpop.f32.mrf.mxu0
        %v1047 = vadd.f32 %v886, %v1046
        %v1048 = vpop.f32.mrf.mxu0
        %1049 = vmatprep.mubr.bf16.mxu0 %v459
        %1050 = vmatmul.mubr.bf16.gmra.mxu0 %v458
        %v1051 = vpop.f32.mrf.mxu0
        %v1052 = vadd.f32 %v891, %v1051
        %v1053 = vpop.f32.mrf.mxu0
        %v1054 = vpop.f32.mrf.mxu0
        %v1055 = vadd.f32 %v894, %v1054
        %v1056 = vpop.f32.mrf.mxu0
        %1057 = vmatprep.mubr.bf16.mxu0 %v463
        %1058 = vmatmul.mubr.bf16.gmra.mxu0 %v462
        %v1059 = vpop.f32.mrf.mxu0
        %v1060 = vadd.f32 %v899, %v1059
        %v1061 = vpop.f32.mrf.mxu0
        %v1062 = vpop.f32.mrf.mxu0
        %v1063 = vadd.f32 %v902, %v1062
        %v1064 = vpop.f32.mrf.mxu0
        %1065 = vmatprep.mubr.bf16.mxu0 %v467
        %1066 = vmatmul.mubr.bf16.gmra.mxu0 %v466
        %v1067 = vpop.f32.mrf.mxu0
        %v1068 = vadd.f32 %v907, %v1067
        %v1069 = vpop.f32.mrf.mxu0
        %v1070 = vpop.f32.mrf.mxu0
        %v1071 = vadd.f32 %v910, %v1070
        %v1072 = vpop.f32.mrf.mxu0
        %1073 = vmatprep.mubr.bf16.mxu0 %v471
        %1074 = vmatmul.mubr.bf16.gmra.mxu0 %v470
        %v1075 = vpop.f32.mrf.mxu0
        %v1076 = vadd.f32 %v915, %v1075
        %v1077 = vpop.f32.mrf.mxu0
        %v1078 = vpop.f32.mrf.mxu0
        %v1079 = vadd.f32 %v918, %v1078
        %v1080 = vpop.f32.mrf.mxu0
        %1081 = vdwg.mxu0
        %v1082 = vadd.f32 %v472, %v956
        %v1083 = vadd.f32 %v473, %v959
        %v1084 = vadd.f32 %v474, %v964
        %v1085 = vadd.f32 %v475, %v967
        %v1086 = vadd.f32 %v476, %v972
        %v1087 = vadd.f32 %v477, %v975
        %v1088 = vadd.f32 %v478, %v980
        %v1089 = vadd.f32 %v479, %v983
        %v1090 = vadd.f32 %v480, %v988
        %v1091 = vadd.f32 %v481, %v991
        %v1092 = vadd.f32 %v482, %v996
        %v1093 = vadd.f32 %v483, %v999
        %v1094 = vadd.f32 %v484, %v1004
        %v1095 = vadd.f32 %v485, %v1007
        %v1096 = vadd.f32 %v486, %v1012
        %v1097 = vadd.f32 %v487, %v1015
        %v1098 = vadd.f32 %v488, %v1020
        %v1099 = vadd.f32 %v489, %v1023
        %v1100 = vadd.f32 %v490, %v1028
        %v1101 = vadd.f32 %v491, %v1031
        %v1102 = vadd.f32 %v492, %v1036
        %v1103 = vadd.f32 %v493, %v1039
        %v1104 = vadd.f32 %v494, %v1044
        %v1105 = vadd.f32 %v495, %v1047
        %v1106 = vadd.f32 %v496, %v1052
        %v1107 = vadd.f32 %v497, %v1055
        %v1108 = vadd.f32 %v498, %v1060
        %v1109 = vadd.f32 %v499, %v1063
        %v1110 = vadd.f32 %v500, %v1068
        %v1111 = vadd.f32 %v501, %v1071
        %v1112 = vadd.f32 %v502, %v1076
        %v1113 = vadd.f32 %v503, %v1079
        %1114 = vst [vmem:[#allocation2] sm:$0xff] %v1082
        %1115 = vst [vmem:[#allocation2 + $0x8] sm:$0xff] %v1083
        %1116 = vst [vmem:[#allocation2 + $0x10] sm:$0xff] %v1084
        %1117 = vst [vmem:[#allocation2 + $0x18] sm:$0xff] %v1085
        %1118 = vst [vmem:[#allocation2 + $0x20] sm:$0xff] %v1086
        %1119 = vst [vmem:[#allocation2 + $0x28] sm:$0xff] %v1087
        %1120 = vst [vmem:[#allocation2 + $0x30] sm:$0xff] %v1088
        %1121 = vst [vmem:[#allocation2 + $0x38] sm:$0xff] %v1089
        %1122 = vst [vmem:[#allocation2 + $0x40] sm:$0xff] %v1090
        %1123 = vst [vmem:[#allocation2 + $0x48] sm:$0xff] %v1091
        %1124 = vst [vmem:[#allocation2 + $0x50] sm:$0xff] %v1092
        %1125 = vst [vmem:[#allocation2 + $0x58] sm:$0xff] %v1093
        %1126 = vst [vmem:[#allocation2 + $0x60] sm:$0xff] %v1094
        %1127 = vst [vmem:[#allocation2 + $0x68] sm:$0xff] %v1095
        %1128 = vst [vmem:[#allocation2 + $0x70] sm:$0xff] %v1096
        %1129 = vst [vmem:[#allocation2 + $0x78] sm:$0xff] %v1097
        %1130 = vst [vmem:[#allocation2 + $0x80] sm:$0xff] %v1098
        %1131 = vst [vmem:[#allocation2 + $0x88] sm:$0xff] %v1099
        %1132 = vst [vmem:[#allocation2 + $0x90] sm:$0xff] %v1100
        %1133 = vst [vmem:[#allocation2 + $0x98] sm:$0xff] %v1101
        %1134 = vst [vmem:[#allocation2 + $0xa0] sm:$0xff] %v1102
        %1135 = vst [vmem:[#allocation2 + $0xa8] sm:$0xff] %v1103
        %1136 = vst [vmem:[#allocation2 + $0xb0] sm:$0xff] %v1104
        %1137 = vst [vmem:[#allocation2 + $0xb8] sm:$0xff] %v1105
        %1138 = vst [vmem:[#allocation2 + $0xc0] sm:$0xff] %v1106
        %1139 = vst [vmem:[#allocation2 + $0xc8] sm:$0xff] %v1107
        %1140 = vst [vmem:[#allocation2 + $0xd0] sm:$0xff] %v1108
        %1141 = vst [vmem:[#allocation2 + $0xd8] sm:$0xff] %v1109
        %1142 = vst [vmem:[#allocation2 + $0xe0] sm:$0xff] %v1110
        %1143 = vst [vmem:[#allocation2 + $0xe8] sm:$0xff] %v1111
        %1144 = vst [vmem:[#allocation2 + $0xf0] sm:$0xff] %v1112
        %1145 = vst [vmem:[#allocation2 + $0xf8] sm:$0xff] %v1113
        // Predicated region
        $region61: #{tpu_custom_call.1} parent=39 // pred_check
          %p1146 = pneg %p340
        $region62: #{tpu_custom_call.1} parent=39 // pred_check_branch
          %1148 = sbr.rel (%p1146) target = $region64
        $region63: #{tpu_custom_call.1} parent=39 // pred_region
          %v1149 = vld [vmem:[#allocation2] sm:$0xff]
          %v1150 = vld [vmem:[#allocation2 + $0x8] sm:$0xff]
          %v1151 = vld [vmem:[#allocation2 + $0x10] sm:$0xff]
          %v1152 = vld [vmem:[#allocation2 + $0x18] sm:$0xff]
          %v1153 = vld [vmem:[#allocation2 + $0x20] sm:$0xff]
          %v1154 = vld [vmem:[#allocation2 + $0x28] sm:$0xff]
          %v1155 = vld [vmem:[#allocation2 + $0x30] sm:$0xff]
          %v1156 = vld [vmem:[#allocation2 + $0x38] sm:$0xff]
          %v1157 = vld [vmem:[#allocation2 + $0x40] sm:$0xff]
          %v1158 = vld [vmem:[#allocation2 + $0x48] sm:$0xff]
          %v1159 = vld [vmem:[#allocation2 + $0x50] sm:$0xff]
          %v1160 = vld [vmem:[#allocation2 + $0x58] sm:$0xff]
          %v1161 = vld [vmem:[#allocation2 + $0x60] sm:$0xff]
          %v1162 = vld [vmem:[#allocation2 + $0x68] sm:$0xff]
          %v1163 = vld [vmem:[#allocation2 + $0x70] sm:$0xff]
          %v1164 = vld [vmem:[#allocation2 + $0x78] sm:$0xff]
          %v1165 = vld [vmem:[#allocation2 + $0x80] sm:$0xff]
          %v1166 = vld [vmem:[#allocation2 + $0x88] sm:$0xff]
          %v1167 = vld [vmem:[#allocation2 + $0x90] sm:$0xff]
          %v1168 = vld [vmem:[#allocation2 + $0x98] sm:$0xff]
          %v1169 = vld [vmem:[#allocation2 + $0xa0] sm:$0xff]
          %v1170 = vld [vmem:[#allocation2 + $0xa8] sm:$0xff]
          %v1171 = vld [vmem:[#allocation2 + $0xb0] sm:$0xff]
          %v1172 = vld [vmem:[#allocation2 + $0xb8] sm:$0xff]
          %v1173 = vld [vmem:[#allocation2 + $0xc0] sm:$0xff]
          %v1174 = vld [vmem:[#allocation2 + $0xc8] sm:$0xff]
          %v1175 = vld [vmem:[#allocation2 + $0xd0] sm:$0xff]
          %v1176 = vld [vmem:[#allocation2 + $0xd8] sm:$0xff]
          %v1177 = vld [vmem:[#allocation2 + $0xe0] sm:$0xff]
          %v1178 = vld [vmem:[#allocation2 + $0xe8] sm:$0xff]
          %v1179 = vld [vmem:[#allocation2 + $0xf0] sm:$0xff]
          %v1180 = vld [vmem:[#allocation2 + $0xf8] sm:$0xff]
          %v1181 = vpack.c.bf16 %v1150, %v1149
          %v1182 = vpack.c.bf16 %v1152, %v1151
          %v1183 = vpack.c.bf16 %v1154, %v1153
          %v1184 = vpack.c.bf16 %v1156, %v1155
          %v1185 = vpack.c.bf16 %v1158, %v1157
          %v1186 = vpack.c.bf16 %v1160, %v1159
          %v1187 = vpack.c.bf16 %v1162, %v1161
          %v1188 = vpack.c.bf16 %v1164, %v1163
          %v1189 = vpack.c.bf16 %v1166, %v1165
          %v1190 = vpack.c.bf16 %v1168, %v1167
          %v1191 = vpack.c.bf16 %v1170, %v1169
          %v1192 = vpack.c.bf16 %v1172, %v1171
          %v1193 = vpack.c.bf16 %v1174, %v1173
          %v1194 = vpack.c.bf16 %v1176, %v1175
          %v1195 = vpack.c.bf16 %v1178, %v1177
          %v1196 = vpack.c.bf16 %v1180, %v1179
          %v1197 = vld [vmem:[%s298] sm:$0xf]
          %v1198 = vld [vmem:[%s298 + $0x4] sm:$0xf]
          %v1199 = vld [vmem:[%s298 + $0x8] sm:$0xf]
          %v1200 = vld [vmem:[%s298 + $0xc] sm:$0xf]
          %v1201 = vld [vmem:[%s298 + $0x10] sm:$0xf]
          %v1202 = vld [vmem:[%s298 + $0x14] sm:$0xf]
          %v1203 = vld [vmem:[%s298 + $0x18] sm:$0xf]
          %v1204 = vld [vmem:[%s298 + $0x1c] sm:$0xf]
          %v1205 = vld [vmem:[%s298 + $0x20] sm:$0xf]
          %v1206 = vld [vmem:[%s298 + $0x24] sm:$0xf]
          %v1207 = vld [vmem:[%s298 + $0x28] sm:$0xf]
          %v1208 = vld [vmem:[%s298 + $0x2c] sm:$0xf]
          %v1209 = vld [vmem:[%s298 + $0x30] sm:$0xf]
          %v1210 = vld [vmem:[%s298 + $0x34] sm:$0xf]
          %v1211 = vld [vmem:[%s298 + $0x38] sm:$0xf]
          %v1212 = vld [vmem:[%s298 + $0x3c] sm:$0xf]
          %v1213 = vld [vmem:[%s298 + $0x40] sm:$0xf]
          %v1214 = vld [vmem:[%s298 + $0x44] sm:$0xf]
          %v1215 = vld [vmem:[%s298 + $0x48] sm:$0xf]
          %v1216 = vld [vmem:[%s298 + $0x4c] sm:$0xf]
          %v1217 = vld [vmem:[%s298 + $0x50] sm:$0xf]
          %v1218 = vld [vmem:[%s298 + $0x54] sm:$0xf]
          %v1219 = vld [vmem:[%s298 + $0x58] sm:$0xf]
          %v1220 = vld [vmem:[%s298 + $0x5c] sm:$0xf]
          %v1221 = vld [vmem:[%s298 + $0x60] sm:$0xf]
          %v1222 = vld [vmem:[%s298 + $0x64] sm:$0xf]
          %v1223 = vld [vmem:[%s298 + $0x68] sm:$0xf]
          %v1224 = vld [vmem:[%s298 + $0x6c] sm:$0xf]
          %v1225 = vld [vmem:[%s298 + $0x70] sm:$0xf]
          %v1226 = vld [vmem:[%s298 + $0x74] sm:$0xf]
          %v1227 = vld [vmem:[%s298 + $0x78] sm:$0xf]
          %v1228 = vld [vmem:[%s298 + $0x7c] sm:$0xf]
          %v1261 = vunpack.c.l.b16 %v1197
          %v1262 = vunpack.c.l.b16 %v1198
          %v1263 = vunpack.c.l.b16 %v1199
          %v1264 = vunpack.c.l.b16 %v1200
          %v1265 = vunpack.c.l.b16 %v1201
          %v1266 = vunpack.c.l.b16 %v1202
          %v1267 = vunpack.c.l.b16 %v1203
          %v1268 = vunpack.c.l.b16 %v1204
          %v1269 = vunpack.c.l.b16 %v1205
          %v1270 = vunpack.c.l.b16 %v1206
          %v1271 = vunpack.c.l.b16 %v1207
          %v1272 = vunpack.c.l.b16 %v1208
          %v1273 = vunpack.c.l.b16 %v1209
          %v1274 = vunpack.c.l.b16 %v1210
          %v1275 = vunpack.c.l.b16 %v1211
          %v1276 = vunpack.c.l.b16 %v1212
          %v1277 = vunpack.c.l.b16 %v1213
          %v1278 = vunpack.c.l.b16 %v1214
          %v1279 = vunpack.c.l.b16 %v1215
          %v1280 = vunpack.c.l.b16 %v1216
          %v1281 = vunpack.c.l.b16 %v1217
          %v1282 = vunpack.c.l.b16 %v1218
          %v1283 = vunpack.c.l.b16 %v1219
          %v1284 = vunpack.c.l.b16 %v1220
          %v1285 = vunpack.c.l.b16 %v1221
          %v1286 = vunpack.c.l.b16 %v1222
          %v1287 = vunpack.c.l.b16 %v1223
          %v1288 = vunpack.c.l.b16 %v1224
          %v1289 = vunpack.c.l.b16 %v1225
          %v1290 = vunpack.c.l.b16 %v1226
          %v1291 = vunpack.c.l.b16 %v1227
          %v1292 = vunpack.c.l.b16 %v1228
          %v1293 = vpack.c.b16 %v1262, %v1261
          %v1294 = vpack.c.b16 %v1264, %v1263
          %v1295 = vpack.c.b16 %v1266, %v1265
          %v1296 = vpack.c.b16 %v1268, %v1267
          %v1297 = vpack.c.b16 %v1270, %v1269
          %v1298 = vpack.c.b16 %v1272, %v1271
          %v1299 = vpack.c.b16 %v1274, %v1273
          %v1300 = vpack.c.b16 %v1276, %v1275
          %v1301 = vpack.c.b16 %v1278, %v1277
          %v1302 = vpack.c.b16 %v1280, %v1279
          %v1303 = vpack.c.b16 %v1282, %v1281
          %v1304 = vpack.c.b16 %v1284, %v1283
          %v1305 = vpack.c.b16 %v1286, %v1285
          %v1306 = vpack.c.b16 %v1288, %v1287
          %v1307 = vpack.c.b16 %v1290, %v1289
          %v1308 = vpack.c.b16 %v1292, %v1291
          %v1325 = vld [vmem:[#allocation9] sm:$0xf]
          %v1326 = vld [vmem:[#allocation9 + $0x4] sm:$0xf]
          %v1327 = vld [vmem:[#allocation9 + $0x8] sm:$0xf]
          %v1328 = vld [vmem:[#allocation9 + $0xc] sm:$0xf]
          %v1329 = vld [vmem:[#allocation9 + $0x10] sm:$0xf]
          %v1330 = vld [vmem:[#allocation9 + $0x14] sm:$0xf]
          %v1331 = vld [vmem:[#allocation9 + $0x18] sm:$0xf]
          %v1332 = vld [vmem:[#allocation9 + $0x1c] sm:$0xf]
          %v1333 = vld [vmem:[#allocation9 + $0x20] sm:$0xf]
          %v1334 = vld [vmem:[#allocation9 + $0x24] sm:$0xf]
          %v1335 = vld [vmem:[#allocation9 + $0x28] sm:$0xf]
          %v1336 = vld [vmem:[#allocation9 + $0x2c] sm:$0xf]
          %v1337 = vld [vmem:[#allocation9 + $0x30] sm:$0xf]
          %v1338 = vld [vmem:[#allocation9 + $0x34] sm:$0xf]
          %v1339 = vld [vmem:[#allocation9 + $0x38] sm:$0xf]
          %v1340 = vld [vmem:[#allocation9 + $0x3c] sm:$0xf]
          %v1341 = vld [vmem:[#allocation9 + $0x40] sm:$0xf]
          %v1342 = vld [vmem:[#allocation9 + $0x44] sm:$0xf]
          %v1343 = vld [vmem:[#allocation9 + $0x48] sm:$0xf]
          %v1344 = vld [vmem:[#allocation9 + $0x4c] sm:$0xf]
          %v1345 = vld [vmem:[#allocation9 + $0x50] sm:$0xf]
          %v1346 = vld [vmem:[#allocation9 + $0x54] sm:$0xf]
          %v1347 = vld [vmem:[#allocation9 + $0x58] sm:$0xf]
          %v1348 = vld [vmem:[#allocation9 + $0x5c] sm:$0xf]
          %v1349 = vld [vmem:[#allocation9 + $0x60] sm:$0xf]
          %v1350 = vld [vmem:[#allocation9 + $0x64] sm:$0xf]
          %v1351 = vld [vmem:[#allocation9 + $0x68] sm:$0xf]
          %v1352 = vld [vmem:[#allocation9 + $0x6c] sm:$0xf]
          %v1353 = vld [vmem:[#allocation9 + $0x70] sm:$0xf]
          %v1354 = vld [vmem:[#allocation9 + $0x74] sm:$0xf]
          %v1355 = vld [vmem:[#allocation9 + $0x78] sm:$0xf]
          %v1356 = vld [vmem:[#allocation9 + $0x7c] sm:$0xf]
          %v1357 = vld [vmem:[%s4] sm:$0x1]
          %v1359 = vlaneseq
          %v1360 = vshrl.u32 %v1359, 7
          %v1361 = vsub.s32 0, %v1360
          %v1362 = vrot.slane %v1357, %v1361
          %v1396 = vunpack.c.l.b16 %v1325
          %v1397 = vunpack.c.l.b16 %v1326
          %v1398 = vunpack.c.l.b16 %v1327
          %v1399 = vunpack.c.l.b16 %v1328
          %v1400 = vunpack.c.l.b16 %v1329
          %v1401 = vunpack.c.l.b16 %v1330
          %v1402 = vunpack.c.l.b16 %v1331
          %v1403 = vunpack.c.l.b16 %v1332
          %v1404 = vunpack.c.l.b16 %v1333
          %v1405 = vunpack.c.l.b16 %v1334
          %v1406 = vunpack.c.l.b16 %v1335
          %v1407 = vunpack.c.l.b16 %v1336
          %v1408 = vunpack.c.l.b16 %v1337
          %v1409 = vunpack.c.l.b16 %v1338
          %v1410 = vunpack.c.l.b16 %v1339
          %v1411 = vunpack.c.l.b16 %v1340
          %v1412 = vunpack.c.l.b16 %v1341
          %v1413 = vunpack.c.l.b16 %v1342
          %v1414 = vunpack.c.l.b16 %v1343
          %v1415 = vunpack.c.l.b16 %v1344
          %v1416 = vunpack.c.l.b16 %v1345
          %v1417 = vunpack.c.l.b16 %v1346
          %v1418 = vunpack.c.l.b16 %v1347
          %v1419 = vunpack.c.l.b16 %v1348
          %v1420 = vunpack.c.l.b16 %v1349
          %v1421 = vunpack.c.l.b16 %v1350
          %v1422 = vunpack.c.l.b16 %v1351
          %v1423 = vunpack.c.l.b16 %v1352
          %v1424 = vunpack.c.l.b16 %v1353
          %v1425 = vunpack.c.l.b16 %v1354
          %v1426 = vunpack.c.l.b16 %v1355
          %v1427 = vunpack.c.l.b16 %v1356
          %v1428 = vpack.c.b16 %v1397, %v1396
          %v1429 = vpack.c.b16 %v1399, %v1398
          %v1430 = vpack.c.b16 %v1401, %v1400
          %v1431 = vpack.c.b16 %v1403, %v1402
          %v1432 = vpack.c.b16 %v1405, %v1404
          %v1433 = vpack.c.b16 %v1407, %v1406
          %v1434 = vpack.c.b16 %v1409, %v1408
          %v1435 = vpack.c.b16 %v1411, %v1410
          %v1436 = vpack.c.b16 %v1413, %v1412
          %v1437 = vpack.c.b16 %v1415, %v1414
          %v1438 = vpack.c.b16 %v1417, %v1416
          %v1439 = vpack.c.b16 %v1419, %v1418
          %v1440 = vpack.c.b16 %v1421, %v1420
          %v1441 = vpack.c.b16 %v1423, %v1422
          %v1442 = vpack.c.b16 %v1425, %v1424
          %v1443 = vpack.c.b16 %v1427, %v1426
          %1460 = vmatprep.subr.bf16.mxu0 0
          %1461 = vmatpush1.bf16.msra.mxu0 %v1435
          %1462 = vmatprep.subr.bf16.mxu0 0
          %1463 = vmatpush1.bf16.msra.mxu0 %v1434
          %1464 = vmatprep.subr.bf16.mxu0 0
          %1465 = vmatpush1.bf16.msra.mxu0 %v1433
          %1466 = vmatprep.subr.bf16.mxu0 0
          %1467 = vmatpush1.bf16.msra.mxu0 %v1432
          %1468 = vmatprep.subr.bf16.mxu0 0
          %1469 = vmatpush1.bf16.msra.mxu0 %v1431
          %1470 = vmatprep.subr.bf16.mxu0 0
          %1471 = vmatpush1.bf16.msra.mxu0 %v1430
          %1472 = vmatprep.subr.bf16.mxu0 0
          %1473 = vmatpush1.bf16.msra.mxu0 %v1429
          %1474 = vmatprep.subr.bf16.mxu0 0
          %1475 = vmatpush1.bf16.msra.mxu0 %v1428
          %1476 = vmatprep.subr.bf16.mxu0 0
          %1477 = vmatpush2.bf16.msra.mxu0 %v1443
          %1478 = vmatprep.subr.bf16.mxu0 0
          %1479 = vmatpush2.bf16.msra.mxu0 %v1442
          %1480 = vmatprep.subr.bf16.mxu0 0
          %1481 = vmatpush2.bf16.msra.mxu0 %v1441
          %1482 = vmatprep.subr.bf16.mxu0 0
          %1483 = vmatpush2.bf16.msra.mxu0 %v1440
          %1484 = vmatprep.subr.bf16.mxu0 0
          %1485 = vmatpush2.bf16.msra.mxu0 %v1439
          %1486 = vmatprep.subr.bf16.mxu0 0
          %1487 = vmatpush2.bf16.msra.mxu0 %v1438
          %1488 = vmatprep.subr.bf16.mxu0 0
          %1489 = vmatpush2.bf16.msra.mxu0 %v1437
          %1490 = vmatprep.subr.bf16.mxu0 0
          %1491 = vmatpush2.bf16.msra.mxu0 %v1436
          %1492 = vmatprep.mubr.bf16.mxu0 %v1293
          %1493 = vmatmul.mubr.bf16.gmra.mxu0 %v1181
          %v1494 = vpop.f32.mrf.mxu0
          %v1495 = vadd.f32 %v1362, %v1494
          %v1496 = vpop.f32.mrf.mxu0
          %v1497 = vpop.f32.mrf.mxu0
          %v1498 = vadd.f32 %v1362, %v1497
          %v1499 = vpop.f32.mrf.mxu0
          %1500 = vmatprep.mubr.bf16.mxu0 %v1294
          %1501 = vmatmul.mubr.bf16.gmra.mxu0 %v1182
          %v1502 = vpop.f32.mrf.mxu0
          %v1503 = vadd.f32 %v1362, %v1502
          %v1504 = vpop.f32.mrf.mxu0
          %v1505 = vpop.f32.mrf.mxu0
          %v1506 = vadd.f32 %v1362, %v1505
          %v1507 = vpop.f32.mrf.mxu0
          %1508 = vmatprep.mubr.bf16.mxu0 %v1295
          %1509 = vmatmul.mubr.bf16.gmra.mxu0 %v1183
          %v1510 = vpop.f32.mrf.mxu0
          %v1511 = vadd.f32 %v1362, %v1510
          %v1512 = vpop.f32.mrf.mxu0
          %v1513 = vpop.f32.mrf.mxu0
          %v1514 = vadd.f32 %v1362, %v1513
          %v1515 = vpop.f32.mrf.mxu0
          %1516 = vmatprep.mubr.bf16.mxu0 %v1296
          %1517 = vmatmul.mubr.bf16.gmra.mxu0 %v1184
          %v1518 = vpop.f32.mrf.mxu0
          %v1519 = vadd.f32 %v1362, %v1518
          %v1520 = vpop.f32.mrf.mxu0
          %v1521 = vpop.f32.mrf.mxu0
          %v1522 = vadd.f32 %v1362, %v1521
          %v1523 = vpop.f32.mrf.mxu0
          %1524 = vmatprep.mubr.bf16.mxu0 %v1297
          %1525 = vmatmul.mubr.bf16.gmra.mxu0 %v1185
          %v1526 = vpop.f32.mrf.mxu0
          %v1527 = vadd.f32 %v1362, %v1526
          %v1528 = vpop.f32.mrf.mxu0
          %v1529 = vpop.f32.mrf.mxu0
          %v1530 = vadd.f32 %v1362, %v1529
          %v1531 = vpop.f32.mrf.mxu0
          %1532 = vmatprep.mubr.bf16.mxu0 %v1298
          %1533 = vmatmul.mubr.bf16.gmra.mxu0 %v1186
          %v1534 = vpop.f32.mrf.mxu0
          %v1535 = vadd.f32 %v1362, %v1534
          %v1536 = vpop.f32.mrf.mxu0
          %v1537 = vpop.f32.mrf.mxu0
          %v1538 = vadd.f32 %v1362, %v1537
          %v1539 = vpop.f32.mrf.mxu0
          %1540 = vmatprep.mubr.bf16.mxu0 %v1299
          %1541 = vmatmul.mubr.bf16.gmra.mxu0 %v1187
          %v1542 = vpop.f32.mrf.mxu0
          %v1543 = vadd.f32 %v1362, %v1542
          %v1544 = vpop.f32.mrf.mxu0
          %v1545 = vpop.f32.mrf.mxu0
          %v1546 = vadd.f32 %v1362, %v1545
          %v1547 = vpop.f32.mrf.mxu0
          %1548 = vmatprep.mubr.bf16.mxu0 %v1300
          %1549 = vmatmul.mubr.bf16.gmra.mxu0 %v1188
          %v1550 = vpop.f32.mrf.mxu0
          %v1551 = vadd.f32 %v1362, %v1550
          %v1552 = vpop.f32.mrf.mxu0
          %v1553 = vpop.f32.mrf.mxu0
          %v1554 = vadd.f32 %v1362, %v1553
          %v1555 = vpop.f32.mrf.mxu0
          %1556 = vmatprep.mubr.bf16.mxu0 %v1301
          %1557 = vmatmul.mubr.bf16.gmra.mxu0 %v1189
          %v1558 = vpop.f32.mrf.mxu0
          %v1559 = vadd.f32 %v1362, %v1558
          %v1560 = vpop.f32.mrf.mxu0
          %v1561 = vpop.f32.mrf.mxu0
          %v1562 = vadd.f32 %v1362, %v1561
          %v1563 = vpop.f32.mrf.mxu0
          %1564 = vmatprep.mubr.bf16.mxu0 %v1302
          %1565 = vmatmul.mubr.bf16.gmra.mxu0 %v1190
          %v1566 = vpop.f32.mrf.mxu0
          %v1567 = vadd.f32 %v1362, %v1566
          %v1568 = vpop.f32.mrf.mxu0
          %v1569 = vpop.f32.mrf.mxu0
          %v1570 = vadd.f32 %v1362, %v1569
          %v1571 = vpop.f32.mrf.mxu0
          %1572 = vmatprep.mubr.bf16.mxu0 %v1303
          %1573 = vmatmul.mubr.bf16.gmra.mxu0 %v1191
          %v1574 = vpop.f32.mrf.mxu0
          %v1575 = vadd.f32 %v1362, %v1574
          %v1576 = vpop.f32.mrf.mxu0
          %v1577 = vpop.f32.mrf.mxu0
          %v1578 = vadd.f32 %v1362, %v1577
          %v1579 = vpop.f32.mrf.mxu0
          %1580 = vmatprep.mubr.bf16.mxu0 %v1304
          %1581 = vmatmul.mubr.bf16.gmra.mxu0 %v1192
          %v1582 = vpop.f32.mrf.mxu0
          %v1583 = vadd.f32 %v1362, %v1582
          %v1584 = vpop.f32.mrf.mxu0
          %v1585 = vpop.f32.mrf.mxu0
          %v1586 = vadd.f32 %v1362, %v1585
          %v1587 = vpop.f32.mrf.mxu0
          %1588 = vmatprep.mubr.bf16.mxu0 %v1305
          %1589 = vmatmul.mubr.bf16.gmra.mxu0 %v1193
          %v1590 = vpop.f32.mrf.mxu0
          %v1591 = vadd.f32 %v1362, %v1590
          %v1592 = vpop.f32.mrf.mxu0
          %v1593 = vpop.f32.mrf.mxu0
          %v1594 = vadd.f32 %v1362, %v1593
          %v1595 = vpop.f32.mrf.mxu0
          %1596 = vmatprep.mubr.bf16.mxu0 %v1306
          %1597 = vmatmul.mubr.bf16.gmra.mxu0 %v1194
          %v1598 = vpop.f32.mrf.mxu0
          %v1599 = vadd.f32 %v1362, %v1598
          %v1600 = vpop.f32.mrf.mxu0
          %v1601 = vpop.f32.mrf.mxu0
          %v1602 = vadd.f32 %v1362, %v1601
          %v1603 = vpop.f32.mrf.mxu0
          %1604 = vmatprep.mubr.bf16.mxu0 %v1307
          %1605 = vmatmul.mubr.bf16.gmra.mxu0 %v1195
          %v1606 = vpop.f32.mrf.mxu0
          %v1607 = vadd.f32 %v1362, %v1606
          %v1608 = vpop.f32.mrf.mxu0
          %v1609 = vpop.f32.mrf.mxu0
          %v1610 = vadd.f32 %v1362, %v1609
          %v1611 = vpop.f32.mrf.mxu0
          %1612 = vmatprep.mubr.bf16.mxu0 %v1308
          %1613 = vmatmul.mubr.bf16.gmra.mxu0 %v1196
          %v1614 = vpop.f32.mrf.mxu0
          %v1615 = vadd.f32 %v1362, %v1614
          %v1616 = vpop.f32.mrf.mxu0
          %v1617 = vpop.f32.mrf.mxu0
          %v1618 = vadd.f32 %v1362, %v1617
          %v1619 = vpop.f32.mrf.mxu0
          %1620 = vdwg.mxu0
          %v1621 = vmax.f32 %v1495, 0.0
          %v1622 = vmax.f32 %v1498, 0.0
          %v1623 = vmax.f32 %v1503, 0.0
          %v1624 = vmax.f32 %v1506, 0.0
          %v1625 = vmax.f32 %v1511, 0.0
          %v1626 = vmax.f32 %v1514, 0.0
          %v1627 = vmax.f32 %v1519, 0.0
          %v1628 = vmax.f32 %v1522, 0.0
          %v1629 = vmax.f32 %v1527, 0.0
          %v1630 = vmax.f32 %v1530, 0.0
          %v1631 = vmax.f32 %v1535, 0.0
          %v1632 = vmax.f32 %v1538, 0.0
          %v1633 = vmax.f32 %v1543, 0.0
          %v1634 = vmax.f32 %v1546, 0.0
          %v1635 = vmax.f32 %v1551, 0.0
          %v1636 = vmax.f32 %v1554, 0.0
          %v1637 = vmax.f32 %v1559, 0.0
          %v1638 = vmax.f32 %v1562, 0.0
          %v1639 = vmax.f32 %v1567, 0.0
          %v1640 = vmax.f32 %v1570, 0.0
          %v1641 = vmax.f32 %v1575, 0.0
          %v1642 = vmax.f32 %v1578, 0.0
          %v1643 = vmax.f32 %v1583, 0.0
          %v1644 = vmax.f32 %v1586, 0.0
          %v1645 = vmax.f32 %v1591, 0.0
          %v1646 = vmax.f32 %v1594, 0.0
          %v1647 = vmax.f32 %v1599, 0.0
          %v1648 = vmax.f32 %v1602, 0.0
          %v1649 = vmax.f32 %v1607, 0.0
          %v1650 = vmax.f32 %v1610, 0.0
          %v1651 = vmax.f32 %v1615, 0.0
          %v1652 = vmax.f32 %v1618, 0.0
          %v1653 = vpack.c.bf16 %v1622, %v1621
          %v1654 = vpack.c.bf16 %v1624, %v1623
          %v1655 = vpack.c.bf16 %v1626, %v1625
          %v1656 = vpack.c.bf16 %v1628, %v1627
          %v1657 = vpack.c.bf16 %v1630, %v1629
          %v1658 = vpack.c.bf16 %v1632, %v1631
          %v1659 = vpack.c.bf16 %v1634, %v1633
          %v1660 = vpack.c.bf16 %v1636, %v1635
          %v1661 = vpack.c.bf16 %v1638, %v1637
          %v1662 = vpack.c.bf16 %v1640, %v1639
          %v1663 = vpack.c.bf16 %v1642, %v1641
          %v1664 = vpack.c.bf16 %v1644, %v1643
          %v1665 = vpack.c.bf16 %v1646, %v1645
          %v1666 = vpack.c.bf16 %v1648, %v1647
          %v1667 = vpack.c.bf16 %v1650, %v1649
          %v1668 = vpack.c.bf16 %v1652, %v1651
          %v1685 = vunpack.c.l.b16 %v1653
          %v1686 = vunpack.c.h.b16 %v1653
          %v1687 = vunpack.c.l.b16 %v1654
          %v1688 = vunpack.c.h.b16 %v1654
          %v1689 = vunpack.c.l.b16 %v1655
          %v1690 = vunpack.c.h.b16 %v1655
          %v1691 = vunpack.c.l.b16 %v1656
          %v1692 = vunpack.c.h.b16 %v1656
          %v1693 = vunpack.c.l.b16 %v1657
          %v1694 = vunpack.c.h.b16 %v1657
          %v1695 = vunpack.c.l.b16 %v1658
          %v1696 = vunpack.c.h.b16 %v1658
          %v1697 = vunpack.c.l.b16 %v1659
          %v1698 = vunpack.c.h.b16 %v1659
          %v1699 = vunpack.c.l.b16 %v1660
          %v1700 = vunpack.c.h.b16 %v1660
          %v1701 = vunpack.c.l.b16 %v1661
          %v1702 = vunpack.c.h.b16 %v1661
          %v1703 = vunpack.c.l.b16 %v1662
          %v1704 = vunpack.c.h.b16 %v1662
          %v1705 = vunpack.c.l.b16 %v1663
          %v1706 = vunpack.c.h.b16 %v1663
          %v1707 = vunpack.c.l.b16 %v1664
          %v1708 = vunpack.c.h.b16 %v1664
          %v1709 = vunpack.c.l.b16 %v1665
          %v1710 = vunpack.c.h.b16 %v1665
          %v1711 = vunpack.c.l.b16 %v1666
          %v1712 = vunpack.c.h.b16 %v1666
          %v1713 = vunpack.c.l.b16 %v1667
          %v1714 = vunpack.c.h.b16 %v1667
          %v1715 = vunpack.c.l.b16 %v1668
          %v1716 = vunpack.c.h.b16 %v1668
          %v1717 = vpack.c.b16 %v1685, %v1685
          %v1718 = vpack.c.b16 %v1686, %v1686
          %v1719 = vpack.c.b16 %v1687, %v1687
          %v1720 = vpack.c.b16 %v1688, %v1688
          %v1721 = vpack.c.b16 %v1689, %v1689
          %v1722 = vpack.c.b16 %v1690, %v1690
          %v1723 = vpack.c.b16 %v1691, %v1691
          %v1724 = vpack.c.b16 %v1692, %v1692
          %v1725 = vpack.c.b16 %v1693, %v1693
          %v1726 = vpack.c.b16 %v1694, %v1694
          %v1727 = vpack.c.b16 %v1695, %v1695
          %v1728 = vpack.c.b16 %v1696, %v1696
          %v1729 = vpack.c.b16 %v1697, %v1697
          %v1730 = vpack.c.b16 %v1698, %v1698
          %v1731 = vpack.c.b16 %v1699, %v1699
          %v1732 = vpack.c.b16 %v1700, %v1700
          %v1733 = vpack.c.b16 %v1701, %v1701
          %v1734 = vpack.c.b16 %v1702, %v1702
          %v1735 = vpack.c.b16 %v1703, %v1703
          %v1736 = vpack.c.b16 %v1704, %v1704
          %v1737 = vpack.c.b16 %v1705, %v1705
          %v1738 = vpack.c.b16 %v1706, %v1706
          %v1739 = vpack.c.b16 %v1707, %v1707
          %v1740 = vpack.c.b16 %v1708, %v1708
          %v1741 = vpack.c.b16 %v1709, %v1709
          %v1742 = vpack.c.b16 %v1710, %v1710
          %v1743 = vpack.c.b16 %v1711, %v1711
          %v1744 = vpack.c.b16 %v1712, %v1712
          %v1745 = vpack.c.b16 %v1713, %v1713
          %v1746 = vpack.c.b16 %v1714, %v1714
          %v1747 = vpack.c.b16 %v1715, %v1715
          %v1748 = vpack.c.b16 %v1716, %v1716
          %1781 = vst [vmem:[%s333] sm:$0xf] %v1717
          %1782 = vst [vmem:[%s333 + $0x4] sm:$0xf] %v1718
          %1783 = vst [vmem:[%s333 + $0x8] sm:$0xf] %v1719
          %1784 = vst [vmem:[%s333 + $0xc] sm:$0xf] %v1720
          %1785 = vst [vmem:[%s333 + $0x10] sm:$0xf] %v1721
          %1786 = vst [vmem:[%s333 + $0x14] sm:$0xf] %v1722
          %1787 = vst [vmem:[%s333 + $0x18] sm:$0xf] %v1723
          %1788 = vst [vmem:[%s333 + $0x1c] sm:$0xf] %v1724
          %1789 = vst [vmem:[%s333 + $0x20] sm:$0xf] %v1725
          %1790 = vst [vmem:[%s333 + $0x24] sm:$0xf] %v1726
          %1791 = vst [vmem:[%s333 + $0x28] sm:$0xf] %v1727
          %1792 = vst [vmem:[%s333 + $0x2c] sm:$0xf] %v1728
          %1793 = vst [vmem:[%s333 + $0x30] sm:$0xf] %v1729
          %1794 = vst [vmem:[%s333 + $0x34] sm:$0xf] %v1730
          %1795 = vst [vmem:[%s333 + $0x38] sm:$0xf] %v1731
          %1796 = vst [vmem:[%s333 + $0x3c] sm:$0xf] %v1732
          %1797 = vst [vmem:[%s333 + $0x40] sm:$0xf] %v1733
          %1798 = vst [vmem:[%s333 + $0x44] sm:$0xf] %v1734
          %1799 = vst [vmem:[%s333 + $0x48] sm:$0xf] %v1735
          %1800 = vst [vmem:[%s333 + $0x4c] sm:$0xf] %v1736
          %1801 = vst [vmem:[%s333 + $0x50] sm:$0xf] %v1737
          %1802 = vst [vmem:[%s333 + $0x54] sm:$0xf] %v1738
          %1803 = vst [vmem:[%s333 + $0x58] sm:$0xf] %v1739
          %1804 = vst [vmem:[%s333 + $0x5c] sm:$0xf] %v1740
          %1805 = vst [vmem:[%s333 + $0x60] sm:$0xf] %v1741
          %1806 = vst [vmem:[%s333 + $0x64] sm:$0xf] %v1742
          %1807 = vst [vmem:[%s333 + $0x68] sm:$0xf] %v1743
          %1808 = vst [vmem:[%s333 + $0x6c] sm:$0xf] %v1744
          %1809 = vst [vmem:[%s333 + $0x70] sm:$0xf] %v1745
          %1810 = vst [vmem:[%s333 + $0x74] sm:$0xf] %v1746
          %1811 = vst [vmem:[%s333 + $0x78] sm:$0xf] %v1747
          %1812 = vst [vmem:[%s333 + $0x7c] sm:$0xf] %v1748
        $region64: #{tpu_custom_call.1} parent=39 // pred_fallthru
          _
        %s1813 = sand.u32 %s165, 1
        %s1814 = scalar_lea.sflag [#allocation5], %s1813
        %s1815 = sand.u32 %s165, 1
        %s1816 = smul.addr %s1815, 128
        %s1817 = scalar_lea.vmem [#allocation10], %s1816
        // Predicated region
        $region65: #{tpu_custom_call.1} parent=39 // pred_check
          %p1818 = pneg %p175
        $region66: #{tpu_custom_call.1} parent=39 // pred_check_branch
          %1820 = sbr.rel (%p1818) target = $region68
        $region67: #{tpu_custom_call.1} parent=39 // pred_region
          %s1821 = smul.u32 32, %s27
          %s1823 = ssub.s32 2048, 2048
          %1824 = vsyncadd %s1814, %s1823
          %s1825 = smul.addr %s1821, 64
          %s1826 = scalar_lea.hbm %s5, %s1825
          %s1827 = sshll.u32 %s1817, 4
          %s1828 = int_to_ptr.vmem [resolvable:$true] %s1827
          %1833 = dma.vmem_to_hbm [thread:$0]  %s1828, 2048, %s1826, %s1814, 64, 64, 4
        $region68: #{tpu_custom_call.1} parent=39 // pred_fallthru
          _
      $region40: #{tpu_custom_call.1} parent=5 // pred_fallthru
        _
      %p1834 = scmp.le.s32.totalorder 2, %s18
      // Predicated region
      $region69: #{tpu_custom_call.1} parent=5 // pred_check
        %p1835 = pneg %p1834
      $region70: #{tpu_custom_call.1} parent=5 // pred_check_branch
        %1837 = sbr.rel (%p1835) target = $region72
      $region71: #{tpu_custom_call.1} parent=5 // pred_region
        %s1838 = ssub.s32 %s18, 2
        // Predicated region
        $region73: #{tpu_custom_call.1} parent=71 // pred_check
          %p1839 = pneg %p181
        $region74: #{tpu_custom_call.1} parent=71 // pred_check_branch
          %1841 = sbr.rel (%p1839) target = $region76
        $region75: #{tpu_custom_call.1} parent=71 // pred_region
          %s1842 = sand.u32 %s166, 1
          %s1843 = scalar_lea.sflag [#allocation5], %s1842
          %s1844 = sand.u32 %s166, 1
          %s1845 = smul.addr %s1844, 128
          %s1846 = scalar_lea.vmem [#allocation10], %s1845
          %1847 = dma.done %s1843, 2048
        $region76: #{tpu_custom_call.1} parent=71 // pred_fallthru
          _
      $region72: #{tpu_custom_call.1} parent=5 // pred_fallthru
        _
    $region6: #{tpu_custom_call.1} parent=1 // loop_footer
      %s22 = sadd.s32 1, %s18
    $region7: #{tpu_custom_call.1} parent=1 // loop_footer_branch
      %17 = sbr.rel target = $region3
    $region8: #{tpu_custom_call.1} parent=1 // loop_exit
      _
    %1848 = vsyncpa [#allocation4], 1
    %s1849 = scalar_lea.sflag [#allocation4], 1
    %1850 = vsyncpa %s1849, 1
    %1851 = vsyncpa [#allocation7], 1
    %1852 = vsyncpa [#allocation5], 1
    %s1853 = scalar_lea.sflag [#allocation5], 1
    %1854 = vsyncpa %s1853, 1

</llo_original>
